<compile_context>
chip_gen: v5e
topology: v5e:2x2
jax: 0.10.0
libtpu: 0.0.40
codegen_flags: <defaults>
</compile_context>

<pallas_src>
import functools

import jax
import jax.numpy as jnp
from jax import lax
from jax.experimental import pallas as pl
from jax.experimental.pallas import tpu as pltpu

_BIG = 1e30  # masks padded codebook rows out of the argmin


def _vq_kernel(x_ref, neg2et_ref, e_ref, esq_ref,
               quant_ref, enc_ref, sqerr_ref, counts_ref,
               *, n_valid, mask_tail):
    # x_ref:      (TN, D)       flat inputs tile
    # neg2et_ref: (D, Kp)       resident -2 * E^T (padded columns are zero)
    # e_ref:      (Kp, D)       resident (padded) embedding table
    # esq_ref:    (1, Kp)       resident ||e||^2 (+BIG on padded rows)
    # quant_ref:  (TN, D)       quantized outputs tile
    # enc_ref:    (TN, Kp)      one-hot encodings tile (lane-dense)
    # sqerr_ref:  (1, 1, 1)     per-tile sum of (quantized - inputs)^2
    # counts_ref: (1, 1, Kp)    per-tile per-code counts
    x = x_ref[...]                                   # (TN, D)  f32
    neg2et = neg2et_ref[...]                         # (D, Kp)  f32
    e = e_ref[...]                                   # (Kp, D)  f32
    e_sq = esq_ref[...]                              # (1, Kp)  f32

    tn = x.shape[0]
    kp = e.shape[0]

    # distances up to the per-row constant ||x||^2 (argmin-invariant):
    #   dist = ||e||^2 - 2 x E^T   (the -2 and the transpose are pre-folded)
    dist = e_sq + jnp.dot(x, neg2et, preferred_element_type=jnp.float32)

    # first-occurrence argmin along K (matches torch.argmin), kept as one-hot
    min_d = jnp.min(dist, axis=1, keepdims=True)                 # (TN, 1)
    iota_k = lax.broadcasted_iota(jnp.int32, (tn, kp), 1)        # (TN, Kp)
    masked_idx = jnp.where(dist == min_d, iota_k, kp)
    idx = jnp.min(masked_idx, axis=1, keepdims=True)             # (TN, 1)
    enc = (iota_k == idx).astype(jnp.float32)                    # (TN, Kp)

    if mask_tail:
        # zero out the one-hot for padded tail rows so counts / sq-err / the
        # gather matmul are unaffected (padded x rows are zeros as well).
        row = (pl.program_id(0) * tn
               + lax.broadcasted_iota(jnp.int32, (tn, 1), 0))
        enc = jnp.where(row < n_valid, enc, 0.0)

    # codebook gather on the MXU
    quant = jnp.dot(enc, e, preferred_element_type=jnp.float32)  # (TN, D)

    quant_ref[...] = quant.astype(quant_ref.dtype)
    enc_ref[...] = enc.astype(enc_ref.dtype)

    # per-tile partial reductions (summed in the wrapper) -> grid stays parallel
    diff = quant - x
    sqerr_ref[...] = jnp.sum(diff * diff).reshape(1, 1, 1)

    # per-code counts = column sums of the one-hot, done on the MXU via a
    # ones-row matmul (keeps the saturated VPU/XLU slots free).
    ones8 = jnp.ones((8, tn), jnp.float32)
    col_sums = jnp.dot(ones8, enc, preferred_element_type=jnp.float32)  # (8, Kp)
    counts_ref[...] = col_sums[0:1, :].reshape(1, 1, kp)


def _vmem_budget():
    """Returns (vmem_limit_bytes, usable_fraction) per TPU generation."""
    phys = None
    try:
        info = pltpu.get_tpu_info()
        phys = getattr(info, "vmem_capacity_bytes", None)
    except Exception:
        phys = None
    if not phys:
        return 64 * 1024 * 1024, 0.7          # unknown: safe on every gen
    phys = int(phys)
    if phys >= 96 * 1024 * 1024:              # v5e / v6e: 128 MiB physical
        return 96 * 1024 * 1024, 0.8
    return phys // 2, 0.7                     # v7x: 64 MiB/TC -> 32 MiB limit


def _pick_tile_n(n, d, k_pad, usable_bytes):
    """Largest power-of-two tile_n whose live set fits the usable VMEM."""
    d_pad = max(d, 128)                       # minor dim lane-pads to 128
    # per-row cost: streamed x (2 bufs) + quant out (2 bufs) + ~2 (TN, D)
    # temporaries, plus one-hot out (2 bufs) + ~6 (TN, Kp) temporaries
    # (dist, iota, masked_idx, enc, ones row, matmul staging).
    bytes_per_row = 4 * (6 * d_pad + 8 * k_pad)
    # resident (double-buffered) codebook copies + ||e||^2 + partial outputs
    resident = 8 * (k_pad * d_pad + max(d, 8) * k_pad + 8 * k_pad) + 64 * 1024
    avail = max(usable_bytes - resident, bytes_per_row * 8)
    tile = 8
    for cand in (8192, 4096, 2048, 1024, 512, 256, 128, 64, 32, 16, 8):
        if cand * bytes_per_row <= avail:
            tile = cand
            break
    n_pad8 = ((n + 7) // 8) * 8
    if tile > n_pad8:                         # don't tile past the problem
        tile = n_pad8
    return tile


def vector_quantizer_forward(x_nchw, embedding, commitment_cost):
    """Pallas VectorQuantizer forward.

    x_nchw:    (B, C, H, W) float32, C == embedding_dim
    embedding: (K, D) float32 codebook
    Returns (loss, quantized_nchw, perplexity, encodings) like the torch module.
    """
    b, c, h, w = x_nchw.shape
    k, d = embedding.shape
    assert c == d, "channel dim must equal embedding_dim"

    # TODO(synk): fold the NCHW<->NHWC transposes into the Pallas pipeline
    # (grid over spatial tiles + in-kernel relayout) to save the extra HBM
    # round trips of the activations on either side of the kernel.
    x_nhwc = jnp.transpose(x_nchw, (0, 2, 3, 1))
    flat = x_nhwc.reshape(-1, d).astype(jnp.float32)
    n = flat.shape[0]

    # Pad the codebook to a multiple of 128 codes -> lane-dense matmuls /
    # argmin / counts; padded codes are masked out of the argmin via e_sq.
    k_pad = max(128, ((k + 127) // 128) * 128)
    e_f32 = embedding.astype(jnp.float32)
    e_sq = jnp.sum(e_f32 * e_f32, axis=1)
    if k_pad > k:
        e_f32 = jnp.concatenate(
            [e_f32, jnp.zeros((k_pad - k, d), jnp.float32)], axis=0)
        e_sq = jnp.concatenate(
            [e_sq, jnp.full((k_pad - k,), _BIG, jnp.float32)], axis=0)
    e_sq = e_sq.reshape(1, k_pad)
    # pre-transposed, pre-scaled distance operand: computed once, reused for
    # every row of every tile (no in-kernel e.T, no in-kernel -2 multiply).
    neg2_e_t = jnp.transpose(-2.0 * e_f32)            # (D, Kp)

    budget, frac = _vmem_budget()
    tile_n = _pick_tile_n(n, d, k_pad, int(budget * frac))

    # pad N up to a multiple of tile_n; tail rows are masked in-kernel.
    n_pad = ((n + tile_n - 1) // tile_n) * tile_n
    mask_tail = n_pad > n
    if mask_tail:
        flat_in = jnp.concatenate(
            [flat, jnp.zeros((n_pad - n, d), jnp.float32)], axis=0)
    else:
        flat_in = flat

    grid = (n_pad // tile_n,)
    n_tiles = grid[0]

    kernel = functools.partial(_vq_kernel, n_valid=n, mask_tail=mask_tail)

    out_shapes = (
        jax.ShapeDtypeStruct((n_pad, d), jnp.float32),           # quantized flat
        jax.ShapeDtypeStruct((n_pad, k_pad), jnp.float32),       # one-hot encodings
        jax.ShapeDtypeStruct((n_tiles, 1, 1), jnp.float32),      # per-tile sq-err
        jax.ShapeDtypeStruct((n_tiles, 1, k_pad), jnp.float32),  # per-tile counts
    )

    quant_flat, enc_flat, sqerr_part, counts_part = pl.pallas_call(
        kernel,
        out_shape=out_shapes,
        grid_spec=pltpu.PrefetchScalarGridSpec(
            num_scalar_prefetch=0,
            grid=grid,
            in_specs=[
                pl.BlockSpec((tile_n, d), lambda i: (i, 0)),       # flat inputs
                pl.BlockSpec((d, k_pad), lambda i: (0, 0)),        # -2 E^T (resident)
                pl.BlockSpec((k_pad, d), lambda i: (0, 0)),        # embedding (resident)
                pl.BlockSpec((1, k_pad), lambda i: (0, 0)),        # ||e||^2 (resident)
            ],
            out_specs=[
                pl.BlockSpec((tile_n, d), lambda i: (i, 0)),       # quantized
                pl.BlockSpec((tile_n, k_pad), lambda i: (i, 0)),   # encodings
                pl.BlockSpec((1, 1, 1), lambda i: (i, 0, 0)),      # sq-err partials
                pl.BlockSpec((1, 1, k_pad), lambda i: (i, 0, 0)),  # counts partials
            ],
        ),
        compiler_params=pltpu.CompilerParams(
            dimension_semantics=("parallel",),
            vmem_limit_bytes=int(budget),
        ),
    )(flat_in, neg2_e_t, e_f32, e_sq)

    # --- scalar glue (matches torch forward semantics) ---
    mse = jnp.sum(sqerr_part) / jnp.float32(n * d)
    # forward values: q_latent_loss == e_latent_loss == mse (detach only affects grads)
    loss = mse + commitment_cost * mse

    counts = jnp.sum(counts_part, axis=(0, 1))[:k]
    avg_probs = counts / jnp.float32(n)
    perplexity = jnp.exp(-jnp.sum(avg_probs * jnp.log(avg_probs + 1e-10)))

    # encodings come lane-dense straight from the kernel; drop padded rows/cols
    encodings = enc_flat[:n, :k]

    # straight-through estimator: forward value is just `quantized`
    # TODO(synk): no custom_vjp here, so detach()/straight-through gradient
    # semantics of the torch module are not reproduced under jax.grad.
    quant_nchw = jnp.transpose(quant_flat[:n].reshape(b, h, w, d), (0, 3, 1, 2))
    return loss, quant_nchw, perplexity, encodings


if __name__ == "__main__":
    key = jax.random.PRNGKey(0)
    k_x, k_e = jax.random.split(key)

    # Small shapes consistent with the module: B=2, C=embedding_dim=4, H=W=16
    num_embeddings = 8
    embedding_dim = 4
    commitment_cost = 0.25

    x = jax.random.normal(k_x, (2, embedding_dim, 16, 16), dtype=jnp.float32)
    # nn.Embedding weight init: uniform(-1/K, 1/K), deterministic here
    embedding = jax.random.uniform(
        k_e, (num_embeddings, embedding_dim),
        minval=-1.0 / num_embeddings, maxval=1.0 / num_embeddings,
        dtype=jnp.float32)

    loss, quantized, perplexity, encodings = jax.jit(
        functools.partial(vector_quantizer_forward,
                          commitment_cost=commitment_cost))(x, embedding)
    jax.block_until_ready((loss, quantized, perplexity, encodings))

    # light sanity checks against a pure-JAX reference
    flat = jnp.transpose(x, (0, 2, 3, 1)).reshape(-1, embedding_dim)
    dist = (jnp.sum(flat**2, 1, keepdims=True) + jnp.sum(embedding**2, 1)
            - 2.0 * flat @ embedding.T)
    idx_ref = jnp.argmin(dist, axis=1)
    enc_ref = jax.nn.one_hot(idx_ref, num_embeddings, dtype=jnp.float32)
    quant_ref = (enc_ref @ embedding).reshape(2, 16, 16, embedding_dim)
    quant_ref = jnp.transpose(quant_ref, (0, 3, 1, 2))
    mse_ref = jnp.mean((quant_ref - x) ** 2)
    loss_ref = mse_ref + commitment_cost * mse_ref
    avg_ref = jnp.mean(enc_ref, axis=0)
    perp_ref = jnp.exp(-jnp.sum(avg_ref * jnp.log(avg_ref + 1e-10)))

    assert quantized.shape == x.shape and encodings.shape == (512, num_embeddings)
    assert jnp.allclose(quantized, quant_ref, atol=1e-5), "quantized mismatch"
    assert jnp.allclose(encodings, enc_ref, atol=1e-6), "encodings mismatch"
    assert jnp.allclose(loss, loss_ref, atol=1e-5), "loss mismatch"
    assert jnp.allclose(perplexity, perp_ref, atol=1e-4), "perplexity mismatch"

    print("KERNEL_OK")
</pallas_src>

<mosaic_0001>
module attributes {stable_mosaic.version = 11 : i64} {
  func.func @_vq_kernel(%arg0: i32, %arg1: memref<512x4xf32, #tpu.memory_space<vmem>>, %arg2: memref<4x128xf32, #tpu.memory_space<vmem>>, %arg3: memref<128x4xf32, #tpu.memory_space<vmem>>, %arg4: memref<1x128xf32, #tpu.memory_space<vmem>>, %arg5: memref<512x4xf32, #tpu.memory_space<vmem>>, %arg6: memref<512x128xf32, #tpu.memory_space<vmem>>, %arg7: memref<1x1x1xf32, #tpu.memory_space<vmem>>, %arg8: memref<1x1x128xf32, #tpu.memory_space<vmem>>) attributes {dimension_semantics = [#tpu.dimension_semantics<parallel>], iteration_bounds = array<i64: 1>, scalar_prefetch = 0 : i64, scratch_operands = 0 : i64, tpu.core_type = #tpu.core_type<tc>, window_params = [{transform_indices = @transform_0, window_bounds = array<i64: 512, 4>}, {pipeline_mode = #tpu.pipeline_mode<synchronous>, transform_indices = @transform_1, window_bounds = array<i64: 4, 128>}, {pipeline_mode = #tpu.pipeline_mode<synchronous>, transform_indices = @transform_2, window_bounds = array<i64: 128, 4>}, {pipeline_mode = #tpu.pipeline_mode<synchronous>, transform_indices = @transform_3, window_bounds = array<i64: 1, 128>}, {transform_indices = @transform_4, window_bounds = array<i64: 512, 4>}, {transform_indices = @transform_5, window_bounds = array<i64: 512, 128>}, {transform_indices = @transform_6, window_bounds = array<i64: 1, 1, 1>}, {transform_indices = @transform_7, window_bounds = array<i64: 1, 1, 128>}]} {
    %c0 = arith.constant 0 : index
    %c0_0 = arith.constant 0 : index
    %0 = vector.load %arg1[%c0, %c0_0] : memref<512x4xf32, #tpu.memory_space<vmem>>, vector<512x4xf32>
    %c0_1 = arith.constant 0 : index
    %c0_2 = arith.constant 0 : index
    %1 = vector.load %arg2[%c0_1, %c0_2] : memref<4x128xf32, #tpu.memory_space<vmem>>, vector<4x128xf32>
    %c0_3 = arith.constant 0 : index
    %c0_4 = arith.constant 0 : index
    %2 = vector.load %arg3[%c0_3, %c0_4] : memref<128x4xf32, #tpu.memory_space<vmem>>, vector<128x4xf32>
    %c0_5 = arith.constant 0 : index
    %c0_6 = arith.constant 0 : index
    %3 = vector.load %arg4[%c0_5, %c0_6] : memref<1x128xf32, #tpu.memory_space<vmem>>, vector<1x128xf32>
    %cst = arith.constant dense<0.000000e+00> : vector<512x128xf32>
    %4 = tpu.matmul %0, %1, %cst {dimension_numbers = #tpu.dot_dimension_numbers<[1], [0], [0], [1], [0, 0, 1, 1], [], []>} : vector<512x4xf32>, vector<4x128xf32>, vector<512x128xf32> -> vector<512x128xf32>
    %5 = vector.broadcast %3 : vector<1x128xf32> to vector<512x128xf32>
    %6 = arith.addf %5, %4 : vector<512x128xf32>
    %cst_7 = arith.constant dense<0x7F800000> : vector<512xf32>
    %7 = vector.multi_reduction <minimumf>, %6, %cst_7 [1] : vector<512x128xf32> to vector<512xf32>
    %8 = vector.shape_cast %7 : vector<512xf32> to vector<512x1xf32>
    %9 = tpu.iota {dimensions = array<i32: 1>} : vector<512x128xi32>
    %10 = vector.broadcast %8 : vector<512x1xf32> to vector<512x128xf32>
    %11 = arith.cmpf oeq, %6, %10 : vector<512x128xf32>
    %c128_i32 = arith.constant 128 : i32
    %12 = vector.broadcast %c128_i32 : i32 to vector<512x128xi32>
    %13 = arith.select %11, %9, %12 : vector<512x128xi1>, vector<512x128xi32>
    %cst_8 = arith.constant dense<2147483647> : vector<512xi32>
    %14 = vector.multi_reduction <minsi>, %13, %cst_8 [1] : vector<512x128xi32> to vector<512xi32>
    %15 = vector.shape_cast %14 : vector<512xi32> to vector<512x1xi32>
    %16 = vector.broadcast %15 : vector<512x1xi32> to vector<512x128xi32>
    %17 = arith.cmpi eq, %9, %16 : vector<512x128xi32>
    %18 = arith.extui %17 : vector<512x128xi1> to vector<512x128xi32>
    %19 = arith.sitofp %18 : vector<512x128xi32> to vector<512x128xf32>
    %cst_9 = arith.constant dense<0.000000e+00> : vector<512x4xf32>
    %20 = tpu.matmul %19, %2, %cst_9 {dimension_numbers = #tpu.dot_dimension_numbers<[1], [0], [0], [1], [0, 0, 1, 1], [], []>} : vector<512x128xf32>, vector<128x4xf32>, vector<512x4xf32> -> vector<512x4xf32>
    %c0_10 = arith.constant 0 : index
    %c0_11 = arith.constant 0 : index
    %21 = vector.load %arg5[%c0_10, %c0_11] : memref<512x4xf32, #tpu.memory_space<vmem>>, vector<512x4xf32>
    tpu.vector_store %arg5[%c0_10, %c0_11], %20 {strides = array<i32>} : memref<512x4xf32, #tpu.memory_space<vmem>>, vector<512x4xf32>,
    %c0_12 = arith.constant 0 : index
    %c0_13 = arith.constant 0 : index
    %22 = vector.load %arg6[%c0_12, %c0_13] : memref<512x128xf32, #tpu.memory_space<vmem>>, vector<512x128xf32>
    tpu.vector_store %arg6[%c0_12, %c0_13], %19 {strides = array<i32>} : memref<512x128xf32, #tpu.memory_space<vmem>>, vector<512x128xf32>,
    %23 = arith.subf %20, %0 : vector<512x4xf32>
    %24 = arith.mulf %23, %23 : vector<512x4xf32>
    %25 = vector.shape_cast %24 : vector<512x4xf32> to vector<1x512x4xf32>
    %cst_14 = arith.constant dense<0.000000e+00> : vector<1xf32>
    %26 = vector.multi_reduction <add>, %25, %cst_14 [1, 2] : vector<1x512x4xf32> to vector<1xf32>
    %27 = vector.shape_cast %26 : vector<1xf32> to vector<1x1x1xf32>
    %28 = vector.extract %27[0, 0, 0] : f32 from vector<1x1x1xf32>
    %29 = vector.broadcast %28 : f32 to vector<1x1x1xf32>
    %c0_15 = arith.constant 0 : index
    %c0_16 = arith.constant 0 : index
    %c0_17 = arith.constant 0 : index
    %30 = vector.load %arg7[%c0_15, %c0_16, %c0_17] : memref<1x1x1xf32, #tpu.memory_space<vmem>>, vector<1x1x1xf32>
    tpu.vector_store %arg7[%c0_15, %c0_16, %c0_17], %29 {strides = array<i32>} : memref<1x1x1xf32, #tpu.memory_space<vmem>>, vector<1x1x1xf32>,
    %cst_18 = arith.constant 1.000000e+00 : f32
    %31 = vector.broadcast %cst_18 : f32 to vector<8x512xf32>
    %cst_19 = arith.constant dense<0.000000e+00> : vector<8x128xf32>
    %32 = tpu.matmul %31, %19, %cst_19 {dimension_numbers = #tpu.dot_dimension_numbers<[1], [0], [0], [1], [0, 0, 1, 1], [], []>} : vector<8x512xf32>, vector<512x128xf32>, vector<8x128xf32> -> vector<8x128xf32>
    %33 = vector.extract_strided_slice %32 {offsets = [0, 0], sizes = [1, 128], strides = [1, 1]} : vector<8x128xf32> to vector<1x128xf32>
    %34 = vector.shape_cast %33 : vector<1x128xf32> to vector<1x1x128xf32>
    %c0_20 = arith.constant 0 : index
    %c0_21 = arith.constant 0 : index
    %c0_22 = arith.constant 0 : index
    %35 = vector.load %arg8[%c0_20, %c0_21, %c0_22] : memref<1x1x128xf32, #tpu.memory_space<vmem>>, vector<1x1x128xf32>
    tpu.vector_store %arg8[%c0_20, %c0_21, %c0_22], %34 {strides = array<i32>} : memref<1x1x128xf32, #tpu.memory_space<vmem>>, vector<1x1x128xf32>,
    return
  }
  func.func @transform_0(%arg0: i32) -> (i32, i32) {
    %c0_i32 = arith.constant 0 : i32
    %c0_i32_0 = arith.constant 0 : i32
    return %arg0, %c0_i32 : i32, i32
  }
  func.func @transform_1(%arg0: i32) -> (i32, i32) {
    %c0_i32 = arith.constant 0 : i32
    %c0_i32_0 = arith.constant 0 : i32
    %c0_i32_1 = arith.constant 0 : i32
    return %c0_i32, %c0_i32_0 : i32, i32
  }
  func.func @transform_2(%arg0: i32) -> (i32, i32) {
    %c0_i32 = arith.constant 0 : i32
    %c0_i32_0 = arith.constant 0 : i32
    %c0_i32_1 = arith.constant 0 : i32
    return %c0_i32, %c0_i32_0 : i32, i32
  }
  func.func @transform_3(%arg0: i32) -> (i32, i32) {
    %c0_i32 = arith.constant 0 : i32
    %c0_i32_0 = arith.constant 0 : i32
    %c0_i32_1 = arith.constant 0 : i32
    return %c0_i32, %c0_i32_0 : i32, i32
  }
  func.func @transform_4(%arg0: i32) -> (i32, i32) {
    %c0_i32 = arith.constant 0 : i32
    %c0_i32_0 = arith.constant 0 : i32
    return %arg0, %c0_i32 : i32, i32
  }
  func.func @transform_5(%arg0: i32) -> (i32, i32) {
    %c0_i32 = arith.constant 0 : i32
    %c0_i32_0 = arith.constant 0 : i32
    return %arg0, %c0_i32 : i32, i32
  }
  func.func @transform_6(%arg0: i32) -> (i32, i32, i32) {
    %c0_i32 = arith.constant 0 : i32
    %c0_i32_0 = arith.constant 0 : i32
    %c0_i32_1 = arith.constant 0 : i32
    return %arg0, %c0_i32, %c0_i32_0 : i32, i32, i32
  }
  func.func @transform_7(%arg0: i32) -> (i32, i32, i32) {
    %c0_i32 = arith.constant 0 : i32
    %c0_i32_0 = arith.constant 0 : i32
    %c0_i32_1 = arith.constant 0 : i32
    return %arg0, %c0_i32, %c0_i32_0 : i32, i32, i32
  }
}

</mosaic_0001>

<llo_original>
// kernel: vector_quantizer_forward.1
$region0: #{vector_quantizer_forward.1}
  #allocation0 [shape = 'u32[]', space=smem, size = 0x4, offset = 0x4, fixed_abs, tag = 'smem constant byte address 0x4 - core index']
  #allocation1 [shape = 'u32[72,128]{1,0:T(1,128)}', space=vmem, size = 0x9000, scoped, tag = 'internal scratch']
  %s0 = inlined_call_operand.vmem [shape: f32[512,4], index: 0, kind: input, shape index: {}]
  %s1 = inlined_call_operand.vmem [shape: f32[4,128], index: 1, kind: input, shape index: {}]
  %s2 = inlined_call_operand.vmem [shape: f32[128,4], index: 2, kind: input, shape index: {}]
  %s3 = inlined_call_operand.vmem [shape: f32[1,128], index: 3, kind: input, shape index: {}]
  %s4 = inlined_call_operand.vmem [shape: f32[512,4], index: 4, kind: output, shape index: {0}]
  %s5 = inlined_call_operand.vmem [shape: f32[512,128], index: 5, kind: output, shape index: {1}]
  %s6 = inlined_call_operand.hbm [shape: f32[1,1,1], index: 6, kind: output, shape index: {2}]
  %s7 = inlined_call_operand.vmem [shape: f32[1,1,128], index: 7, kind: output, shape index: {3}]
  %8 = xla_tuple %s4, %s5, %s6, %s7
  %s9 = sld [smem:[#allocation0]]
  $region50: #{vector_quantizer_forward.1} parent=0
    _
  %s11 = ssub.s32 1, %s9
  %s12 = scalar_select 0, %s11, %s9
  $region1: #{vector_quantizer_forward.1} parent=0
    #allocation2 [shape = 'u8[512]{0}', space=vmem, size = 0x400, scoped, tag = 'output window, operand 2, single buffered']
    #allocation3 [shape = 's32[1]{0}', space=sflag, size = 0x4, scoped, tag = 'scoped memory for vector_quantizer_forward.1']
    %13 = vsyncpa [#allocation3], 0
    // Predicated region
    $region2: #{vector_quantizer_forward.1} parent=1 // pred_check
      _
    $region3: #{vector_quantizer_forward.1} parent=1 // pred_check_branch
      %15 = sbr.rel (0) target = $region5
    $region4: #{vector_quantizer_forward.1} parent=1 // pred_region
      _
    $region5: #{vector_quantizer_forward.1} parent=1 // pred_fallthru
      _
    // Predicated region
    $region6: #{vector_quantizer_forward.1} parent=1 // pred_check
      _
    $region7: #{vector_quantizer_forward.1} parent=1 // pred_check_branch
      %17 = sbr.rel (0) target = $region9
    $region8: #{vector_quantizer_forward.1} parent=1 // pred_region
      _
    $region9: #{vector_quantizer_forward.1} parent=1 // pred_fallthru
      _
    // Predicated region
    $region10: #{vector_quantizer_forward.1} parent=1 // pred_check
      _
    $region11: #{vector_quantizer_forward.1} parent=1 // pred_check_branch
      %19 = sbr.rel (0) target = $region13
    $region12: #{vector_quantizer_forward.1} parent=1 // pred_region
      _
    $region13: #{vector_quantizer_forward.1} parent=1 // pred_fallthru
      _
    // Predicated region
    $region14: #{vector_quantizer_forward.1} parent=1 // pred_check
      _
    $region15: #{vector_quantizer_forward.1} parent=1 // pred_check_branch
      %21 = sbr.rel (0) target = $region17
    $region16: #{vector_quantizer_forward.1} parent=1 // pred_region
      _
    $region17: #{vector_quantizer_forward.1} parent=1 // pred_fallthru
      _
    %v22 = vld [vmem:[%s0] sm:$0xff]
    %v23 = vld [vmem:[%s0 + $0x8] sm:$0xff]
    %v24 = vld [vmem:[%s0 + $0x10] sm:$0xff]
    %v25 = vld [vmem:[%s0 + $0x18] sm:$0xff]
    %v26 = vld [vmem:[%s0 + $0x20] sm:$0xff]
    %v27 = vld [vmem:[%s0 + $0x28] sm:$0xff]
    %v28 = vld [vmem:[%s0 + $0x30] sm:$0xff]
    %v29 = vld [vmem:[%s0 + $0x38] sm:$0xff]
    %v30 = vld [vmem:[%s0 + $0x40] sm:$0xff]
    %v31 = vld [vmem:[%s0 + $0x48] sm:$0xff]
    %v32 = vld [vmem:[%s0 + $0x50] sm:$0xff]
    %v33 = vld [vmem:[%s0 + $0x58] sm:$0xff]
    %v34 = vld [vmem:[%s0 + $0x60] sm:$0xff]
    %v35 = vld [vmem:[%s0 + $0x68] sm:$0xff]
    %v36 = vld [vmem:[%s0 + $0x70] sm:$0xff]
    %v37 = vld [vmem:[%s0 + $0x78] sm:$0xff]
    %v38 = vld [vmem:[%s0 + $0x80] sm:$0xff]
    %v39 = vld [vmem:[%s0 + $0x88] sm:$0xff]
    %v40 = vld [vmem:[%s0 + $0x90] sm:$0xff]
    %v41 = vld [vmem:[%s0 + $0x98] sm:$0xff]
    %v42 = vld [vmem:[%s0 + $0xa0] sm:$0xff]
    %v43 = vld [vmem:[%s0 + $0xa8] sm:$0xff]
    %v44 = vld [vmem:[%s0 + $0xb0] sm:$0xff]
    %v45 = vld [vmem:[%s0 + $0xb8] sm:$0xff]
    %v46 = vld [vmem:[%s0 + $0xc0] sm:$0xff]
    %v47 = vld [vmem:[%s0 + $0xc8] sm:$0xff]
    %v48 = vld [vmem:[%s0 + $0xd0] sm:$0xff]
    %v49 = vld [vmem:[%s0 + $0xd8] sm:$0xff]
    %v50 = vld [vmem:[%s0 + $0xe0] sm:$0xff]
    %v51 = vld [vmem:[%s0 + $0xe8] sm:$0xff]
    %v52 = vld [vmem:[%s0 + $0xf0] sm:$0xff]
    %v53 = vld [vmem:[%s0 + $0xf8] sm:$0xff]
    %v54 = vld [vmem:[%s0 + $0x100] sm:$0xff]
    %v55 = vld [vmem:[%s0 + $0x108] sm:$0xff]
    %v56 = vld [vmem:[%s0 + $0x110] sm:$0xff]
    %v57 = vld [vmem:[%s0 + $0x118] sm:$0xff]
    %v58 = vld [vmem:[%s0 + $0x120] sm:$0xff]
    %v59 = vld [vmem:[%s0 + $0x128] sm:$0xff]
    %v60 = vld [vmem:[%s0 + $0x130] sm:$0xff]
    %v61 = vld [vmem:[%s0 + $0x138] sm:$0xff]
    %v62 = vld [vmem:[%s0 + $0x140] sm:$0xff]
    %v63 = vld [vmem:[%s0 + $0x148] sm:$0xff]
    %v64 = vld [vmem:[%s0 + $0x150] sm:$0xff]
    %v65 = vld [vmem:[%s0 + $0x158] sm:$0xff]
    %v66 = vld [vmem:[%s0 + $0x160] sm:$0xff]
    %v67 = vld [vmem:[%s0 + $0x168] sm:$0xff]
    %v68 = vld [vmem:[%s0 + $0x170] sm:$0xff]
    %v69 = vld [vmem:[%s0 + $0x178] sm:$0xff]
    %v70 = vld [vmem:[%s0 + $0x180] sm:$0xff]
    %v71 = vld [vmem:[%s0 + $0x188] sm:$0xff]
    %v72 = vld [vmem:[%s0 + $0x190] sm:$0xff]
    %v73 = vld [vmem:[%s0 + $0x198] sm:$0xff]
    %v74 = vld [vmem:[%s0 + $0x1a0] sm:$0xff]
    %v75 = vld [vmem:[%s0 + $0x1a8] sm:$0xff]
    %v76 = vld [vmem:[%s0 + $0x1b0] sm:$0xff]
    %v77 = vld [vmem:[%s0 + $0x1b8] sm:$0xff]
    %v78 = vld [vmem:[%s0 + $0x1c0] sm:$0xff]
    %v79 = vld [vmem:[%s0 + $0x1c8] sm:$0xff]
    %v80 = vld [vmem:[%s0 + $0x1d0] sm:$0xff]
    %v81 = vld [vmem:[%s0 + $0x1d8] sm:$0xff]
    %v82 = vld [vmem:[%s0 + $0x1e0] sm:$0xff]
    %v83 = vld [vmem:[%s0 + $0x1e8] sm:$0xff]
    %v84 = vld [vmem:[%s0 + $0x1f0] sm:$0xff]
    %v85 = vld [vmem:[%s0 + $0x1f8] sm:$0xff]
    %v86 = vld [vmem:[%s1] sm:$0xf]
    %v87 = vld [vmem:[%s2] sm:$0xff]
    %v88 = vld [vmem:[%s2 + $0x8] sm:$0xff]
    %v89 = vld [vmem:[%s2 + $0x10] sm:$0xff]
    %v90 = vld [vmem:[%s2 + $0x18] sm:$0xff]
    %v91 = vld [vmem:[%s2 + $0x20] sm:$0xff]
    %v92 = vld [vmem:[%s2 + $0x28] sm:$0xff]
    %v93 = vld [vmem:[%s2 + $0x30] sm:$0xff]
    %v94 = vld [vmem:[%s2 + $0x38] sm:$0xff]
    %v95 = vld [vmem:[%s2 + $0x40] sm:$0xff]
    %v96 = vld [vmem:[%s2 + $0x48] sm:$0xff]
    %v97 = vld [vmem:[%s2 + $0x50] sm:$0xff]
    %v98 = vld [vmem:[%s2 + $0x58] sm:$0xff]
    %v99 = vld [vmem:[%s2 + $0x60] sm:$0xff]
    %v100 = vld [vmem:[%s2 + $0x68] sm:$0xff]
    %v101 = vld [vmem:[%s2 + $0x70] sm:$0xff]
    %v102 = vld [vmem:[%s2 + $0x78] sm:$0xff]
    %v103 = vld [vmem:[%s3] sm:$0x1]
    %vm104 = vcmask 31744
    %v106 = vsel %vm104, %v22, 0
    %v109 = vsel %vm104, %v23, 0
    %v112 = vsel %vm104, %v24, 0
    %v115 = vsel %vm104, %v25, 0
    %v118 = vsel %vm104, %v26, 0
    %v121 = vsel %vm104, %v27, 0
    %v124 = vsel %vm104, %v28, 0
    %v127 = vsel %vm104, %v29, 0
    %v130 = vsel %vm104, %v30, 0
    %v133 = vsel %vm104, %v31, 0
    %v136 = vsel %vm104, %v32, 0
    %v139 = vsel %vm104, %v33, 0
    %v142 = vsel %vm104, %v34, 0
    %v145 = vsel %vm104, %v35, 0
    %v148 = vsel %vm104, %v36, 0
    %v151 = vsel %vm104, %v37, 0
    %v154 = vsel %vm104, %v38, 0
    %v157 = vsel %vm104, %v39, 0
    %v160 = vsel %vm104, %v40, 0
    %v163 = vsel %vm104, %v41, 0
    %v166 = vsel %vm104, %v42, 0
    %v169 = vsel %vm104, %v43, 0
    %v172 = vsel %vm104, %v44, 0
    %v175 = vsel %vm104, %v45, 0
    %v178 = vsel %vm104, %v46, 0
    %v181 = vsel %vm104, %v47, 0
    %v184 = vsel %vm104, %v48, 0
    %v187 = vsel %vm104, %v49, 0
    %v190 = vsel %vm104, %v50, 0
    %v193 = vsel %vm104, %v51, 0
    %v196 = vsel %vm104, %v52, 0
    %v199 = vsel %vm104, %v53, 0
    %v202 = vsel %vm104, %v54, 0
    %v205 = vsel %vm104, %v55, 0
    %v208 = vsel %vm104, %v56, 0
    %v211 = vsel %vm104, %v57, 0
    %v214 = vsel %vm104, %v58, 0
    %v217 = vsel %vm104, %v59, 0
    %v220 = vsel %vm104, %v60, 0
    %v223 = vsel %vm104, %v61, 0
    %v226 = vsel %vm104, %v62, 0
    %v229 = vsel %vm104, %v63, 0
    %v232 = vsel %vm104, %v64, 0
    %v235 = vsel %vm104, %v65, 0
    %v238 = vsel %vm104, %v66, 0
    %v241 = vsel %vm104, %v67, 0
    %v244 = vsel %vm104, %v68, 0
    %v247 = vsel %vm104, %v69, 0
    %v250 = vsel %vm104, %v70, 0
    %v253 = vsel %vm104, %v71, 0
    %v256 = vsel %vm104, %v72, 0
    %v259 = vsel %vm104, %v73, 0
    %v262 = vsel %vm104, %v74, 0
    %v265 = vsel %vm104, %v75, 0
    %v268 = vsel %vm104, %v76, 0
    %v271 = vsel %vm104, %v77, 0
    %v274 = vsel %vm104, %v78, 0
    %v277 = vsel %vm104, %v79, 0
    %v280 = vsel %vm104, %v80, 0
    %v283 = vsel %vm104, %v81, 0
    %v286 = vsel %vm104, %v82, 0
    %v289 = vsel %vm104, %v83, 0
    %v292 = vsel %vm104, %v84, 0
    %v295 = vsel %vm104, %v85, 0
    %vm297 = vcmask 1043456
    %v299 = vsel %vm297, %v86, 0
    %301 = vmatpush.msra.mxu0 0.0
    %302 = vmatpush.msra.mxu0 0.0
    %303 = vmatpush.msra.mxu0 0.0
    %304 = vmatpush.msra.mxu0 0.0
    %305 = vmatpush.msra.mxu0 0.0
    %306 = vmatpush.msra.mxu0 0.0
    %307 = vmatpush.msra.mxu0 0.0
    %308 = vmatpush.msra.mxu0 0.0
    %309 = vmatpush.msra.mxu0 0.0
    %310 = vmatpush.msra.mxu0 0.0
    %311 = vmatpush.msra.mxu0 0.0
    %312 = vmatpush.msra.mxu0 0.0
    %313 = vmatpush.msra.mxu0 0.0
    %314 = vmatpush.msra.mxu0 0.0
    %315 = vmatpush.msra.mxu0 0.0
    %316 = vmatpush.msra.mxu0 %v299
    %317 = vmatmul.f32.gmra.mxu0 %v106
    %v318 = vpop.f32.mrf.mxu0
    %v319 = vadd.f32 0.0, %v318
    %320 = vmatmul.f32.gmra.mxu0 %v109
    %v321 = vpop.f32.mrf.mxu0
    %v322 = vadd.f32 0.0, %v321
    %323 = vmatmul.f32.gmra.mxu0 %v112
    %v324 = vpop.f32.mrf.mxu0
    %v325 = vadd.f32 0.0, %v324
    %326 = vmatmul.f32.gmra.mxu0 %v115
    %v327 = vpop.f32.mrf.mxu0
    %v328 = vadd.f32 0.0, %v327
    %329 = vmatmul.f32.gmra.mxu0 %v118
    %v330 = vpop.f32.mrf.mxu0
    %v331 = vadd.f32 0.0, %v330
    %332 = vmatmul.f32.gmra.mxu0 %v121
    %v333 = vpop.f32.mrf.mxu0
    %v334 = vadd.f32 0.0, %v333
    %335 = vmatmul.f32.gmra.mxu0 %v124
    %v336 = vpop.f32.mrf.mxu0
    %v337 = vadd.f32 0.0, %v336
    %338 = vmatmul.f32.gmra.mxu0 %v127
    %v339 = vpop.f32.mrf.mxu0
    %v340 = vadd.f32 0.0, %v339
    %341 = vmatmul.f32.gmra.mxu0 %v130
    %v342 = vpop.f32.mrf.mxu0
    %v343 = vadd.f32 0.0, %v342
    %344 = vmatmul.f32.gmra.mxu0 %v133
    %v345 = vpop.f32.mrf.mxu0
    %v346 = vadd.f32 0.0, %v345
    %347 = vmatmul.f32.gmra.mxu0 %v136
    %v348 = vpop.f32.mrf.mxu0
    %v349 = vadd.f32 0.0, %v348
    %350 = vmatmul.f32.gmra.mxu0 %v139
    %v351 = vpop.f32.mrf.mxu0
    %v352 = vadd.f32 0.0, %v351
    %353 = vmatmul.f32.gmra.mxu0 %v142
    %v354 = vpop.f32.mrf.mxu0
    %v355 = vadd.f32 0.0, %v354
    %356 = vmatmul.f32.gmra.mxu0 %v145
    %v357 = vpop.f32.mrf.mxu0
    %v358 = vadd.f32 0.0, %v357
    %359 = vmatmul.f32.gmra.mxu0 %v148
    %v360 = vpop.f32.mrf.mxu0
    %v361 = vadd.f32 0.0, %v360
    %362 = vmatmul.f32.gmra.mxu0 %v151
    %v363 = vpop.f32.mrf.mxu0
    %v364 = vadd.f32 0.0, %v363
    %365 = vmatmul.f32.gmra.mxu0 %v154
    %v366 = vpop.f32.mrf.mxu0
    %v367 = vadd.f32 0.0, %v366
    %368 = vmatmul.f32.gmra.mxu0 %v157
    %v369 = vpop.f32.mrf.mxu0
    %v370 = vadd.f32 0.0, %v369
    %371 = vmatmul.f32.gmra.mxu0 %v160
    %v372 = vpop.f32.mrf.mxu0
    %v373 = vadd.f32 0.0, %v372
    %374 = vmatmul.f32.gmra.mxu0 %v163
    %v375 = vpop.f32.mrf.mxu0
    %v376 = vadd.f32 0.0, %v375
    %377 = vmatmul.f32.gmra.mxu0 %v166
    %v378 = vpop.f32.mrf.mxu0
    %v379 = vadd.f32 0.0, %v378
    %380 = vmatmul.f32.gmra.mxu0 %v169
    %v381 = vpop.f32.mrf.mxu0
    %v382 = vadd.f32 0.0, %v381
    %383 = vmatmul.f32.gmra.mxu0 %v172
    %v384 = vpop.f32.mrf.mxu0
    %v385 = vadd.f32 0.0, %v384
    %386 = vmatmul.f32.gmra.mxu0 %v175
    %v387 = vpop.f32.mrf.mxu0
    %v388 = vadd.f32 0.0, %v387
    %389 = vmatmul.f32.gmra.mxu0 %v178
    %v390 = vpop.f32.mrf.mxu0
    %v391 = vadd.f32 0.0, %v390
    %392 = vmatmul.f32.gmra.mxu0 %v181
    %v393 = vpop.f32.mrf.mxu0
    %v394 = vadd.f32 0.0, %v393
    %395 = vmatmul.f32.gmra.mxu0 %v184
    %v396 = vpop.f32.mrf.mxu0
    %v397 = vadd.f32 0.0, %v396
    %398 = vmatmul.f32.gmra.mxu0 %v187
    %v399 = vpop.f32.mrf.mxu0
    %v400 = vadd.f32 0.0, %v399
    %401 = vmatmul.f32.gmra.mxu0 %v190
    %v402 = vpop.f32.mrf.mxu0
    %v403 = vadd.f32 0.0, %v402
    %404 = vmatmul.f32.gmra.mxu0 %v193
    %v405 = vpop.f32.mrf.mxu0
    %v406 = vadd.f32 0.0, %v405
    %407 = vmatmul.f32.gmra.mxu0 %v196
    %v408 = vpop.f32.mrf.mxu0
    %v409 = vadd.f32 0.0, %v408
    %410 = vmatmul.f32.gmra.mxu0 %v199
    %v411 = vpop.f32.mrf.mxu0
    %v412 = vadd.f32 0.0, %v411
    %413 = vmatmul.f32.gmra.mxu0 %v202
    %v414 = vpop.f32.mrf.mxu0
    %v415 = vadd.f32 0.0, %v414
    %416 = vmatmul.f32.gmra.mxu0 %v205
    %v417 = vpop.f32.mrf.mxu0
    %v418 = vadd.f32 0.0, %v417
    %419 = vmatmul.f32.gmra.mxu0 %v208
    %v420 = vpop.f32.mrf.mxu0
    %v421 = vadd.f32 0.0, %v420
    %422 = vmatmul.f32.gmra.mxu0 %v211
    %v423 = vpop.f32.mrf.mxu0
    %v424 = vadd.f32 0.0, %v423
    %425 = vmatmul.f32.gmra.mxu0 %v214
    %v426 = vpop.f32.mrf.mxu0
    %v427 = vadd.f32 0.0, %v426
    %428 = vmatmul.f32.gmra.mxu0 %v217
    %v429 = vpop.f32.mrf.mxu0
    %v430 = vadd.f32 0.0, %v429
    %431 = vmatmul.f32.gmra.mxu0 %v220
    %v432 = vpop.f32.mrf.mxu0
    %v433 = vadd.f32 0.0, %v432
    %434 = vmatmul.f32.gmra.mxu0 %v223
    %v435 = vpop.f32.mrf.mxu0
    %v436 = vadd.f32 0.0, %v435
    %437 = vmatmul.f32.gmra.mxu0 %v226
    %v438 = vpop.f32.mrf.mxu0
    %v439 = vadd.f32 0.0, %v438
    %440 = vmatmul.f32.gmra.mxu0 %v229
    %v441 = vpop.f32.mrf.mxu0
    %v442 = vadd.f32 0.0, %v441
    %443 = vmatmul.f32.gmra.mxu0 %v232
    %v444 = vpop.f32.mrf.mxu0
    %v445 = vadd.f32 0.0, %v444
    %446 = vmatmul.f32.gmra.mxu0 %v235
    %v447 = vpop.f32.mrf.mxu0
    %v448 = vadd.f32 0.0, %v447
    %449 = vmatmul.f32.gmra.mxu0 %v238
    %v450 = vpop.f32.mrf.mxu0
    %v451 = vadd.f32 0.0, %v450
    %452 = vmatmul.f32.gmra.mxu0 %v241
    %v453 = vpop.f32.mrf.mxu0
    %v454 = vadd.f32 0.0, %v453
    %455 = vmatmul.f32.gmra.mxu0 %v244
    %v456 = vpop.f32.mrf.mxu0
    %v457 = vadd.f32 0.0, %v456
    %458 = vmatmul.f32.gmra.mxu0 %v247
    %v459 = vpop.f32.mrf.mxu0
    %v460 = vadd.f32 0.0, %v459
    %461 = vmatmul.f32.gmra.mxu0 %v250
    %v462 = vpop.f32.mrf.mxu0
    %v463 = vadd.f32 0.0, %v462
    %464 = vmatmul.f32.gmra.mxu0 %v253
    %v465 = vpop.f32.mrf.mxu0
    %v466 = vadd.f32 0.0, %v465
    %467 = vmatmul.f32.gmra.mxu0 %v256
    %v468 = vpop.f32.mrf.mxu0
    %v469 = vadd.f32 0.0, %v468
    %470 = vmatmul.f32.gmra.mxu0 %v259
    %v471 = vpop.f32.mrf.mxu0
    %v472 = vadd.f32 0.0, %v471
    %473 = vmatmul.f32.gmra.mxu0 %v262
    %v474 = vpop.f32.mrf.mxu0
    %v475 = vadd.f32 0.0, %v474
    %476 = vmatmul.f32.gmra.mxu0 %v265
    %v477 = vpop.f32.mrf.mxu0
    %v478 = vadd.f32 0.0, %v477
    %479 = vmatmul.f32.gmra.mxu0 %v268
    %v480 = vpop.f32.mrf.mxu0
    %v481 = vadd.f32 0.0, %v480
    %482 = vmatmul.f32.gmra.mxu0 %v271
    %v483 = vpop.f32.mrf.mxu0
    %v484 = vadd.f32 0.0, %v483
    %485 = vmatmul.f32.gmra.mxu0 %v274
    %v486 = vpop.f32.mrf.mxu0
    %v487 = vadd.f32 0.0, %v486
    %488 = vmatmul.f32.gmra.mxu0 %v277
    %v489 = vpop.f32.mrf.mxu0
    %v490 = vadd.f32 0.0, %v489
    %491 = vmatmul.f32.gmra.mxu0 %v280
    %v492 = vpop.f32.mrf.mxu0
    %v493 = vadd.f32 0.0, %v492
    %494 = vmatmul.f32.gmra.mxu0 %v283
    %v495 = vpop.f32.mrf.mxu0
    %v496 = vadd.f32 0.0, %v495
    %497 = vmatmul.f32.gmra.mxu0 %v286
    %v498 = vpop.f32.mrf.mxu0
    %v499 = vadd.f32 0.0, %v498
    %500 = vmatmul.f32.gmra.mxu0 %v289
    %v501 = vpop.f32.mrf.mxu0
    %v502 = vadd.f32 0.0, %v501
    %503 = vmatmul.f32.gmra.mxu0 %v292
    %v504 = vpop.f32.mrf.mxu0
    %v505 = vadd.f32 0.0, %v504
    %506 = vmatmul.f32.gmra.mxu0 %v295
    %v507 = vpop.f32.mrf.mxu0
    %v508 = vadd.f32 0.0, %v507
    %509 = vdwg.mxu0
    %v511 = vperm.slane %v103, 0
    %v513 = vadd.f32 %v511, %v319
    %v514 = vadd.f32 %v511, %v322
    %v515 = vadd.f32 %v511, %v325
    %v516 = vadd.f32 %v511, %v328
    %v517 = vadd.f32 %v511, %v331
    %v518 = vadd.f32 %v511, %v334
    %v519 = vadd.f32 %v511, %v337
    %v520 = vadd.f32 %v511, %v340
    %v521 = vadd.f32 %v511, %v343
    %v522 = vadd.f32 %v511, %v346
    %v523 = vadd.f32 %v511, %v349
    %v524 = vadd.f32 %v511, %v352
    %v525 = vadd.f32 %v511, %v355
    %v526 = vadd.f32 %v511, %v358
    %v527 = vadd.f32 %v511, %v361
    %v528 = vadd.f32 %v511, %v364
    %v529 = vadd.f32 %v511, %v367
    %v530 = vadd.f32 %v511, %v370
    %v531 = vadd.f32 %v511, %v373
    %v532 = vadd.f32 %v511, %v376
    %v533 = vadd.f32 %v511, %v379
    %v534 = vadd.f32 %v511, %v382
    %v535 = vadd.f32 %v511, %v385
    %v536 = vadd.f32 %v511, %v388
    %v537 = vadd.f32 %v511, %v391
    %v538 = vadd.f32 %v511, %v394
    %v539 = vadd.f32 %v511, %v397
    %v540 = vadd.f32 %v511, %v400
    %v541 = vadd.f32 %v511, %v403
    %v542 = vadd.f32 %v511, %v406
    %v543 = vadd.f32 %v511, %v409
    %v544 = vadd.f32 %v511, %v412
    %v545 = vadd.f32 %v511, %v415
    %v546 = vadd.f32 %v511, %v418
    %v547 = vadd.f32 %v511, %v421
    %v548 = vadd.f32 %v511, %v424
    %v549 = vadd.f32 %v511, %v427
    %v550 = vadd.f32 %v511, %v430
    %v551 = vadd.f32 %v511, %v433
    %v552 = vadd.f32 %v511, %v436
    %v553 = vadd.f32 %v511, %v439
    %v554 = vadd.f32 %v511, %v442
    %v555 = vadd.f32 %v511, %v445
    %v556 = vadd.f32 %v511, %v448
    %v557 = vadd.f32 %v511, %v451
    %v558 = vadd.f32 %v511, %v454
    %v559 = vadd.f32 %v511, %v457
    %v560 = vadd.f32 %v511, %v460
    %v561 = vadd.f32 %v511, %v463
    %v562 = vadd.f32 %v511, %v466
    %v563 = vadd.f32 %v511, %v469
    %v564 = vadd.f32 %v511, %v472
    %v565 = vadd.f32 %v511, %v475
    %v566 = vadd.f32 %v511, %v478
    %v567 = vadd.f32 %v511, %v481
    %v568 = vadd.f32 %v511, %v484
    %v569 = vadd.f32 %v511, %v487
    %v570 = vadd.f32 %v511, %v490
    %v571 = vadd.f32 %v511, %v493
    %v572 = vadd.f32 %v511, %v496
    %v573 = vadd.f32 %v511, %v499
    %v574 = vadd.f32 %v511, %v502
    %v575 = vadd.f32 %v511, %v505
    %v576 = vadd.f32 %v511, %v508
    %577 = vmin.xlane.f32.xlu0 %v513
    %v578 = vpop.xlane.xlu0 %577
    %579 = vmin.xlane.f32.xlu0 %v514
    %v580 = vpop.xlane.xlu0 %579
    %581 = vmin.xlane.f32.xlu0 %v515
    %v582 = vpop.xlane.xlu0 %581
    %583 = vmin.xlane.f32.xlu0 %v516
    %v584 = vpop.xlane.xlu0 %583
    %585 = vmin.xlane.f32.xlu0 %v517
    %v586 = vpop.xlane.xlu0 %585
    %587 = vmin.xlane.f32.xlu0 %v518
    %v588 = vpop.xlane.xlu0 %587
    %589 = vmin.xlane.f32.xlu0 %v519
    %v590 = vpop.xlane.xlu0 %589
    %591 = vmin.xlane.f32.xlu0 %v520
    %v592 = vpop.xlane.xlu0 %591
    %593 = vmin.xlane.f32.xlu0 %v521
    %v594 = vpop.xlane.xlu0 %593
    %595 = vmin.xlane.f32.xlu0 %v522
    %v596 = vpop.xlane.xlu0 %595
    %597 = vmin.xlane.f32.xlu0 %v523
    %v598 = vpop.xlane.xlu0 %597
    %599 = vmin.xlane.f32.xlu0 %v524
    %v600 = vpop.xlane.xlu0 %599
    %601 = vmin.xlane.f32.xlu0 %v525
    %v602 = vpop.xlane.xlu0 %601
    %603 = vmin.xlane.f32.xlu0 %v526
    %v604 = vpop.xlane.xlu0 %603
    %605 = vmin.xlane.f32.xlu0 %v527
    %v606 = vpop.xlane.xlu0 %605
    %607 = vmin.xlane.f32.xlu0 %v528
    %v608 = vpop.xlane.xlu0 %607
    %609 = vmin.xlane.f32.xlu0 %v529
    %v610 = vpop.xlane.xlu0 %609
    %611 = vmin.xlane.f32.xlu0 %v530
    %v612 = vpop.xlane.xlu0 %611
    %613 = vmin.xlane.f32.xlu0 %v531
    %v614 = vpop.xlane.xlu0 %613
    %615 = vmin.xlane.f32.xlu0 %v532
    %v616 = vpop.xlane.xlu0 %615
    %617 = vmin.xlane.f32.xlu0 %v533
    %v618 = vpop.xlane.xlu0 %617
    %619 = vmin.xlane.f32.xlu0 %v534
    %v620 = vpop.xlane.xlu0 %619
    %621 = vmin.xlane.f32.xlu0 %v535
    %v622 = vpop.xlane.xlu0 %621
    %623 = vmin.xlane.f32.xlu0 %v536
    %v624 = vpop.xlane.xlu0 %623
    %625 = vmin.xlane.f32.xlu0 %v537
    %v626 = vpop.xlane.xlu0 %625
    %627 = vmin.xlane.f32.xlu0 %v538
    %v628 = vpop.xlane.xlu0 %627
    %629 = vmin.xlane.f32.xlu0 %v539
    %v630 = vpop.xlane.xlu0 %629
    %631 = vmin.xlane.f32.xlu0 %v540
    %v632 = vpop.xlane.xlu0 %631
    %633 = vmin.xlane.f32.xlu0 %v541
    %v634 = vpop.xlane.xlu0 %633
    %635 = vmin.xlane.f32.xlu0 %v542
    %v636 = vpop.xlane.xlu0 %635
    %637 = vmin.xlane.f32.xlu0 %v543
    %v638 = vpop.xlane.xlu0 %637
    %639 = vmin.xlane.f32.xlu0 %v544
    %v640 = vpop.xlane.xlu0 %639
    %641 = vmin.xlane.f32.xlu0 %v545
    %v642 = vpop.xlane.xlu0 %641
    %643 = vmin.xlane.f32.xlu0 %v546
    %v644 = vpop.xlane.xlu0 %643
    %645 = vmin.xlane.f32.xlu0 %v547
    %v646 = vpop.xlane.xlu0 %645
    %647 = vmin.xlane.f32.xlu0 %v548
    %v648 = vpop.xlane.xlu0 %647
    %649 = vmin.xlane.f32.xlu0 %v549
    %v650 = vpop.xlane.xlu0 %649
    %651 = vmin.xlane.f32.xlu0 %v550
    %v652 = vpop.xlane.xlu0 %651
    %653 = vmin.xlane.f32.xlu0 %v551
    %v654 = vpop.xlane.xlu0 %653
    %655 = vmin.xlane.f32.xlu0 %v552
    %v656 = vpop.xlane.xlu0 %655
    %657 = vmin.xlane.f32.xlu0 %v553
    %v658 = vpop.xlane.xlu0 %657
    %659 = vmin.xlane.f32.xlu0 %v554
    %v660 = vpop.xlane.xlu0 %659
    %661 = vmin.xlane.f32.xlu0 %v555
    %v662 = vpop.xlane.xlu0 %661
    %663 = vmin.xlane.f32.xlu0 %v556
    %v664 = vpop.xlane.xlu0 %663
    %665 = vmin.xlane.f32.xlu0 %v557
    %v666 = vpop.xlane.xlu0 %665
    %667 = vmin.xlane.f32.xlu0 %v558
    %v668 = vpop.xlane.xlu0 %667
    %669 = vmin.xlane.f32.xlu0 %v559
    %v670 = vpop.xlane.xlu0 %669
    %671 = vmin.xlane.f32.xlu0 %v560
    %v672 = vpop.xlane.xlu0 %671
    %673 = vmin.xlane.f32.xlu0 %v561
    %v674 = vpop.xlane.xlu0 %673
    %675 = vmin.xlane.f32.xlu0 %v562
    %v676 = vpop.xlane.xlu0 %675
    %677 = vmin.xlane.f32.xlu0 %v563
    %v678 = vpop.xlane.xlu0 %677
    %679 = vmin.xlane.f32.xlu0 %v564
    %v680 = vpop.xlane.xlu0 %679
    %681 = vmin.xlane.f32.xlu0 %v565
    %v682 = vpop.xlane.xlu0 %681
    %683 = vmin.xlane.f32.xlu0 %v566
    %v684 = vpop.xlane.xlu0 %683
    %685 = vmin.xlane.f32.xlu0 %v567
    %v686 = vpop.xlane.xlu0 %685
    %687 = vmin.xlane.f32.xlu0 %v568
    %v688 = vpop.xlane.xlu0 %687
    %689 = vmin.xlane.f32.xlu0 %v569
    %v690 = vpop.xlane.xlu0 %689
    %691 = vmin.xlane.f32.xlu0 %v570
    %v692 = vpop.xlane.xlu0 %691
    %693 = vmin.xlane.f32.xlu0 %v571
    %v694 = vpop.xlane.xlu0 %693
    %695 = vmin.xlane.f32.xlu0 %v572
    %v696 = vpop.xlane.xlu0 %695
    %697 = vmin.xlane.f32.xlu0 %v573
    %v698 = vpop.xlane.xlu0 %697
    %699 = vmin.xlane.f32.xlu0 %v574
    %v700 = vpop.xlane.xlu0 %699
    %701 = vmin.xlane.f32.xlu0 %v575
    %v702 = vpop.xlane.xlu0 %701
    %703 = vmin.xlane.f32.xlu0 %v576
    %v704 = vpop.xlane.xlu0 %703
    %v705 = vlaneseq
    %v706 = vand.u32 %v705, 127
    %vm707 = vcmp.eq.f32.partialorder %v513, %v578
    %vm708 = vcmp.eq.f32.partialorder %v514, %v580
    %vm709 = vcmp.eq.f32.partialorder %v515, %v582
    %vm710 = vcmp.eq.f32.partialorder %v516, %v584
    %vm711 = vcmp.eq.f32.partialorder %v517, %v586
    %vm712 = vcmp.eq.f32.partialorder %v518, %v588
    %vm713 = vcmp.eq.f32.partialorder %v519, %v590
    %vm714 = vcmp.eq.f32.partialorder %v520, %v592
    %vm715 = vcmp.eq.f32.partialorder %v521, %v594
    %vm716 = vcmp.eq.f32.partialorder %v522, %v596
    %vm717 = vcmp.eq.f32.partialorder %v523, %v598
    %vm718 = vcmp.eq.f32.partialorder %v524, %v600
    %vm719 = vcmp.eq.f32.partialorder %v525, %v602
    %vm720 = vcmp.eq.f32.partialorder %v526, %v604
    %vm721 = vcmp.eq.f32.partialorder %v527, %v606
    %vm722 = vcmp.eq.f32.partialorder %v528, %v608
    %vm723 = vcmp.eq.f32.partialorder %v529, %v610
    %vm724 = vcmp.eq.f32.partialorder %v530, %v612
    %vm725 = vcmp.eq.f32.partialorder %v531, %v614
    %vm726 = vcmp.eq.f32.partialorder %v532, %v616
    %vm727 = vcmp.eq.f32.partialorder %v533, %v618
    %vm728 = vcmp.eq.f32.partialorder %v534, %v620
    %vm729 = vcmp.eq.f32.partialorder %v535, %v622
    %vm730 = vcmp.eq.f32.partialorder %v536, %v624
    %vm731 = vcmp.eq.f32.partialorder %v537, %v626
    %vm732 = vcmp.eq.f32.partialorder %v538, %v628
    %vm733 = vcmp.eq.f32.partialorder %v539, %v630
    %vm734 = vcmp.eq.f32.partialorder %v540, %v632
    %vm735 = vcmp.eq.f32.partialorder %v541, %v634
    %vm736 = vcmp.eq.f32.partialorder %v542, %v636
    %vm737 = vcmp.eq.f32.partialorder %v543, %v638
    %vm738 = vcmp.eq.f32.partialorder %v544, %v640
    %vm739 = vcmp.eq.f32.partialorder %v545, %v642
    %vm740 = vcmp.eq.f32.partialorder %v546, %v644
    %vm741 = vcmp.eq.f32.partialorder %v547, %v646
    %vm742 = vcmp.eq.f32.partialorder %v548, %v648
    %vm743 = vcmp.eq.f32.partialorder %v549, %v650
    %vm744 = vcmp.eq.f32.partialorder %v550, %v652
    %vm745 = vcmp.eq.f32.partialorder %v551, %v654
    %vm746 = vcmp.eq.f32.partialorder %v552, %v656
    %vm747 = vcmp.eq.f32.partialorder %v553, %v658
    %vm748 = vcmp.eq.f32.partialorder %v554, %v660
    %vm749 = vcmp.eq.f32.partialorder %v555, %v662
    %vm750 = vcmp.eq.f32.partialorder %v556, %v664
    %vm751 = vcmp.eq.f32.partialorder %v557, %v666
    %vm752 = vcmp.eq.f32.partialorder %v558, %v668
    %vm753 = vcmp.eq.f32.partialorder %v559, %v670
    %vm754 = vcmp.eq.f32.partialorder %v560, %v672
    %vm755 = vcmp.eq.f32.partialorder %v561, %v674
    %vm756 = vcmp.eq.f32.partialorder %v562, %v676
    %vm757 = vcmp.eq.f32.partialorder %v563, %v678
    %vm758 = vcmp.eq.f32.partialorder %v564, %v680
    %vm759 = vcmp.eq.f32.partialorder %v565, %v682
    %vm760 = vcmp.eq.f32.partialorder %v566, %v684
    %vm761 = vcmp.eq.f32.partialorder %v567, %v686
    %vm762 = vcmp.eq.f32.partialorder %v568, %v688
    %vm763 = vcmp.eq.f32.partialorder %v569, %v690
    %vm764 = vcmp.eq.f32.partialorder %v570, %v692
    %vm765 = vcmp.eq.f32.partialorder %v571, %v694
    %vm766 = vcmp.eq.f32.partialorder %v572, %v696
    %vm767 = vcmp.eq.f32.partialorder %v573, %v698
    %vm768 = vcmp.eq.f32.partialorder %v574, %v700
    %vm769 = vcmp.eq.f32.partialorder %v575, %v702
    %vm770 = vcmp.eq.f32.partialorder %v576, %v704
    %v771 = vsel %vm707, %v706, 128
    %v772 = vsel %vm708, %v706, 128
    %v773 = vsel %vm709, %v706, 128
    %v774 = vsel %vm710, %v706, 128
    %v775 = vsel %vm711, %v706, 128
    %v776 = vsel %vm712, %v706, 128
    %v777 = vsel %vm713, %v706, 128
    %v778 = vsel %vm714, %v706, 128
    %v779 = vsel %vm715, %v706, 128
    %v780 = vsel %vm716, %v706, 128
    %v781 = vsel %vm717, %v706, 128
    %v782 = vsel %vm718, %v706, 128
    %v783 = vsel %vm719, %v706, 128
    %v784 = vsel %vm720, %v706, 128
    %v785 = vsel %vm721, %v706, 128
    %v786 = vsel %vm722, %v706, 128
    %v787 = vsel %vm723, %v706, 128
    %v788 = vsel %vm724, %v706, 128
    %v789 = vsel %vm725, %v706, 128
    %v790 = vsel %vm726, %v706, 128
    %v791 = vsel %vm727, %v706, 128
    %v792 = vsel %vm728, %v706, 128
    %v793 = vsel %vm729, %v706, 128
    %v794 = vsel %vm730, %v706, 128
    %v795 = vsel %vm731, %v706, 128
    %v796 = vsel %vm732, %v706, 128
    %v797 = vsel %vm733, %v706, 128
    %v798 = vsel %vm734, %v706, 128
    %v799 = vsel %vm735, %v706, 128
    %v800 = vsel %vm736, %v706, 128
    %v801 = vsel %vm737, %v706, 128
    %v802 = vsel %vm738, %v706, 128
    %v803 = vsel %vm739, %v706, 128
    %v804 = vsel %vm740, %v706, 128
    %v805 = vsel %vm741, %v706, 128
    %v806 = vsel %vm742, %v706, 128
    %v807 = vsel %vm743, %v706, 128
    %v808 = vsel %vm744, %v706, 128
    %v809 = vsel %vm745, %v706, 128
    %v810 = vsel %vm746, %v706, 128
    %v811 = vsel %vm747, %v706, 128
    %v812 = vsel %vm748, %v706, 128
    %v813 = vsel %vm749, %v706, 128
    %v814 = vsel %vm750, %v706, 128
    %v815 = vsel %vm751, %v706, 128
    %v816 = vsel %vm752, %v706, 128
    %v817 = vsel %vm753, %v706, 128
    %v818 = vsel %vm754, %v706, 128
    %v819 = vsel %vm755, %v706, 128
    %v820 = vsel %vm756, %v706, 128
    %v821 = vsel %vm757, %v706, 128
    %v822 = vsel %vm758, %v706, 128
    %v823 = vsel %vm759, %v706, 128
    %v824 = vsel %vm760, %v706, 128
    %v825 = vsel %vm761, %v706, 128
    %v826 = vsel %vm762, %v706, 128
    %v827 = vsel %vm763, %v706, 128
    %v828 = vsel %vm764, %v706, 128
    %v829 = vsel %vm765, %v706, 128
    %v830 = vsel %vm766, %v706, 128
    %v831 = vsel %vm767, %v706, 128
    %v832 = vsel %vm768, %v706, 128
    %v833 = vsel %vm769, %v706, 128
    %v834 = vsel %vm770, %v706, 128
    %v835 = vand.u32 %v771, 65535
    %v836 = vshra.s32 %v771, 16
    %v837 = vcvt.s32.f32 %v835
    %v838 = vcvt.s32.f32 %v836
    %839 = vmin.xlane.f32.xlu0 %v838
    %v840 = vpop.xlane.xlu0 %839
    %vm841 = vcmp.eq.f32.partialorder %v838, %v840
    %v842 = vsel %vm841, %v837, inf
    %843 = vmin.xlane.f32.xlu0 %v842
    %v844 = vpop.xlane.xlu0 %843
    %v845 = vcvt.f32.s32 %v844
    %v846 = vcvt.f32.s32 %v840
    %v847 = vshll.u32 %v846, 16
    %v848 = vadd.s32 %v847, %v845
    %v849 = vand.u32 %v772, 65535
    %v850 = vshra.s32 %v772, 16
    %v851 = vcvt.s32.f32 %v849
    %v852 = vcvt.s32.f32 %v850
    %853 = vmin.xlane.f32.xlu0 %v852
    %v854 = vpop.xlane.xlu0 %853
    %vm855 = vcmp.eq.f32.partialorder %v852, %v854
    %v856 = vsel %vm855, %v851, inf
    %857 = vmin.xlane.f32.xlu0 %v856
    %v858 = vpop.xlane.xlu0 %857
    %v859 = vcvt.f32.s32 %v858
    %v860 = vcvt.f32.s32 %v854
    %v861 = vshll.u32 %v860, 16
    %v862 = vadd.s32 %v861, %v859
    %v863 = vand.u32 %v773, 65535
    %v864 = vshra.s32 %v773, 16
    %v865 = vcvt.s32.f32 %v863
    %v866 = vcvt.s32.f32 %v864
    %867 = vmin.xlane.f32.xlu0 %v866
    %v868 = vpop.xlane.xlu0 %867
    %vm869 = vcmp.eq.f32.partialorder %v866, %v868
    %v870 = vsel %vm869, %v865, inf
    %871 = vmin.xlane.f32.xlu0 %v870
    %v872 = vpop.xlane.xlu0 %871
    %v873 = vcvt.f32.s32 %v872
    %v874 = vcvt.f32.s32 %v868
    %v875 = vshll.u32 %v874, 16
    %v876 = vadd.s32 %v875, %v873
    %v877 = vand.u32 %v774, 65535
    %v878 = vshra.s32 %v774, 16
    %v879 = vcvt.s32.f32 %v877
    %v880 = vcvt.s32.f32 %v878
    %881 = vmin.xlane.f32.xlu0 %v880
    %v882 = vpop.xlane.xlu0 %881
    %vm883 = vcmp.eq.f32.partialorder %v880, %v882
    %v884 = vsel %vm883, %v879, inf
    %885 = vmin.xlane.f32.xlu0 %v884
    %v886 = vpop.xlane.xlu0 %885
    %v887 = vcvt.f32.s32 %v886
    %v888 = vcvt.f32.s32 %v882
    %v889 = vshll.u32 %v888, 16
    %v890 = vadd.s32 %v889, %v887
    %v891 = vand.u32 %v775, 65535
    %v892 = vshra.s32 %v775, 16
    %v893 = vcvt.s32.f32 %v891
    %v894 = vcvt.s32.f32 %v892
    %895 = vmin.xlane.f32.xlu0 %v894
    %v896 = vpop.xlane.xlu0 %895
    %vm897 = vcmp.eq.f32.partialorder %v894, %v896
    %v898 = vsel %vm897, %v893, inf
    %899 = vmin.xlane.f32.xlu0 %v898
    %v900 = vpop.xlane.xlu0 %899
    %v901 = vcvt.f32.s32 %v900
    %v902 = vcvt.f32.s32 %v896
    %v903 = vshll.u32 %v902, 16
    %v904 = vadd.s32 %v903, %v901
    %v905 = vand.u32 %v776, 65535
    %v906 = vshra.s32 %v776, 16
    %v907 = vcvt.s32.f32 %v905
    %v908 = vcvt.s32.f32 %v906
    %909 = vmin.xlane.f32.xlu0 %v908
    %v910 = vpop.xlane.xlu0 %909
    %vm911 = vcmp.eq.f32.partialorder %v908, %v910
    %v912 = vsel %vm911, %v907, inf
    %913 = vmin.xlane.f32.xlu0 %v912
    %v914 = vpop.xlane.xlu0 %913
    %v915 = vcvt.f32.s32 %v914
    %v916 = vcvt.f32.s32 %v910
    %v917 = vshll.u32 %v916, 16
    %v918 = vadd.s32 %v917, %v915
    %v919 = vand.u32 %v777, 65535
    %v920 = vshra.s32 %v777, 16
    %v921 = vcvt.s32.f32 %v919
    %v922 = vcvt.s32.f32 %v920
    %923 = vmin.xlane.f32.xlu0 %v922
    %v924 = vpop.xlane.xlu0 %923
    %vm925 = vcmp.eq.f32.partialorder %v922, %v924
    %v926 = vsel %vm925, %v921, inf
    %927 = vmin.xlane.f32.xlu0 %v926
    %v928 = vpop.xlane.xlu0 %927
    %v929 = vcvt.f32.s32 %v928
    %v930 = vcvt.f32.s32 %v924
    %v931 = vshll.u32 %v930, 16
    %v932 = vadd.s32 %v931, %v929
    %v933 = vand.u32 %v778, 65535
    %v934 = vshra.s32 %v778, 16
    %v935 = vcvt.s32.f32 %v933
    %v936 = vcvt.s32.f32 %v934
    %937 = vmin.xlane.f32.xlu0 %v936
    %v938 = vpop.xlane.xlu0 %937
    %vm939 = vcmp.eq.f32.partialorder %v936, %v938
    %v940 = vsel %vm939, %v935, inf
    %941 = vmin.xlane.f32.xlu0 %v940
    %v942 = vpop.xlane.xlu0 %941
    %v943 = vcvt.f32.s32 %v942
    %v944 = vcvt.f32.s32 %v938
    %v945 = vshll.u32 %v944, 16
    %v946 = vadd.s32 %v945, %v943
    %v947 = vand.u32 %v779, 65535
    %v948 = vshra.s32 %v779, 16
    %v949 = vcvt.s32.f32 %v947
    %v950 = vcvt.s32.f32 %v948
    %951 = vmin.xlane.f32.xlu0 %v950
    %v952 = vpop.xlane.xlu0 %951
    %vm953 = vcmp.eq.f32.partialorder %v950, %v952
    %v954 = vsel %vm953, %v949, inf
    %955 = vmin.xlane.f32.xlu0 %v954
    %v956 = vpop.xlane.xlu0 %955
    %v957 = vcvt.f32.s32 %v956
    %v958 = vcvt.f32.s32 %v952
    %v959 = vshll.u32 %v958, 16
    %v960 = vadd.s32 %v959, %v957
    %v961 = vand.u32 %v780, 65535
    %v962 = vshra.s32 %v780, 16
    %v963 = vcvt.s32.f32 %v961
    %v964 = vcvt.s32.f32 %v962
    %965 = vmin.xlane.f32.xlu0 %v964
    %v966 = vpop.xlane.xlu0 %965
    %vm967 = vcmp.eq.f32.partialorder %v964, %v966
    %v968 = vsel %vm967, %v963, inf
    %969 = vmin.xlane.f32.xlu0 %v968
    %v970 = vpop.xlane.xlu0 %969
    %v971 = vcvt.f32.s32 %v970
    %v972 = vcvt.f32.s32 %v966
    %v973 = vshll.u32 %v972, 16
    %v974 = vadd.s32 %v973, %v971
    %v975 = vand.u32 %v781, 65535
    %v976 = vshra.s32 %v781, 16
    %v977 = vcvt.s32.f32 %v975
    %v978 = vcvt.s32.f32 %v976
    %979 = vmin.xlane.f32.xlu0 %v978
    %v980 = vpop.xlane.xlu0 %979
    %vm981 = vcmp.eq.f32.partialorder %v978, %v980
    %v982 = vsel %vm981, %v977, inf
    %983 = vmin.xlane.f32.xlu0 %v982
    %v984 = vpop.xlane.xlu0 %983
    %v985 = vcvt.f32.s32 %v984
    %v986 = vcvt.f32.s32 %v980
    %v987 = vshll.u32 %v986, 16
    %v988 = vadd.s32 %v987, %v985
    %v989 = vand.u32 %v782, 65535
    %v990 = vshra.s32 %v782, 16
    %v991 = vcvt.s32.f32 %v989
    %v992 = vcvt.s32.f32 %v990
    %993 = vmin.xlane.f32.xlu0 %v992
    %v994 = vpop.xlane.xlu0 %993
    %vm995 = vcmp.eq.f32.partialorder %v992, %v994
    %v996 = vsel %vm995, %v991, inf
    %997 = vmin.xlane.f32.xlu0 %v996
    %v998 = vpop.xlane.xlu0 %997
    %v999 = vcvt.f32.s32 %v998
    %v1000 = vcvt.f32.s32 %v994
    %v1001 = vshll.u32 %v1000, 16
    %v1002 = vadd.s32 %v1001, %v999
    %v1003 = vand.u32 %v783, 65535
    %v1004 = vshra.s32 %v783, 16
    %v1005 = vcvt.s32.f32 %v1003
    %v1006 = vcvt.s32.f32 %v1004
    %1007 = vmin.xlane.f32.xlu0 %v1006
    %v1008 = vpop.xlane.xlu0 %1007
    %vm1009 = vcmp.eq.f32.partialorder %v1006, %v1008
    %v1010 = vsel %vm1009, %v1005, inf
    %1011 = vmin.xlane.f32.xlu0 %v1010
    %v1012 = vpop.xlane.xlu0 %1011
    %v1013 = vcvt.f32.s32 %v1012
    %v1014 = vcvt.f32.s32 %v1008
    %v1015 = vshll.u32 %v1014, 16
    %v1016 = vadd.s32 %v1015, %v1013
    %v1017 = vand.u32 %v784, 65535
    %v1018 = vshra.s32 %v784, 16
    %v1019 = vcvt.s32.f32 %v1017
    %v1020 = vcvt.s32.f32 %v1018
    %1021 = vmin.xlane.f32.xlu0 %v1020
    %v1022 = vpop.xlane.xlu0 %1021
    %vm1023 = vcmp.eq.f32.partialorder %v1020, %v1022
    %v1024 = vsel %vm1023, %v1019, inf
    %1025 = vmin.xlane.f32.xlu0 %v1024
    %v1026 = vpop.xlane.xlu0 %1025
    %v1027 = vcvt.f32.s32 %v1026
    %v1028 = vcvt.f32.s32 %v1022
    %v1029 = vshll.u32 %v1028, 16
    %v1030 = vadd.s32 %v1029, %v1027
    %v1031 = vand.u32 %v785, 65535
    %v1032 = vshra.s32 %v785, 16
    %v1033 = vcvt.s32.f32 %v1031
    %v1034 = vcvt.s32.f32 %v1032
    %1035 = vmin.xlane.f32.xlu0 %v1034
    %v1036 = vpop.xlane.xlu0 %1035
    %vm1037 = vcmp.eq.f32.partialorder %v1034, %v1036
    %v1038 = vsel %vm1037, %v1033, inf
    %1039 = vmin.xlane.f32.xlu0 %v1038
    %v1040 = vpop.xlane.xlu0 %1039
    %v1041 = vcvt.f32.s32 %v1040
    %v1042 = vcvt.f32.s32 %v1036
    %v1043 = vshll.u32 %v1042, 16
    %v1044 = vadd.s32 %v1043, %v1041
    %v1045 = vand.u32 %v786, 65535
    %v1046 = vshra.s32 %v786, 16
    %v1047 = vcvt.s32.f32 %v1045
    %v1048 = vcvt.s32.f32 %v1046
    %1049 = vmin.xlane.f32.xlu0 %v1048
    %v1050 = vpop.xlane.xlu0 %1049
    %vm1051 = vcmp.eq.f32.partialorder %v1048, %v1050
    %v1052 = vsel %vm1051, %v1047, inf
    %1053 = vmin.xlane.f32.xlu0 %v1052
    %v1054 = vpop.xlane.xlu0 %1053
    %v1055 = vcvt.f32.s32 %v1054
    %v1056 = vcvt.f32.s32 %v1050
    %v1057 = vshll.u32 %v1056, 16
    %v1058 = vadd.s32 %v1057, %v1055
    %v1059 = vand.u32 %v787, 65535
    %v1060 = vshra.s32 %v787, 16
    %v1061 = vcvt.s32.f32 %v1059
    %v1062 = vcvt.s32.f32 %v1060
    %1063 = vmin.xlane.f32.xlu0 %v1062
    %v1064 = vpop.xlane.xlu0 %1063
    %vm1065 = vcmp.eq.f32.partialorder %v1062, %v1064
    %v1066 = vsel %vm1065, %v1061, inf
    %1067 = vmin.xlane.f32.xlu0 %v1066
    %v1068 = vpop.xlane.xlu0 %1067
    %v1069 = vcvt.f32.s32 %v1068
    %v1070 = vcvt.f32.s32 %v1064
    %v1071 = vshll.u32 %v1070, 16
    %v1072 = vadd.s32 %v1071, %v1069
    %v1073 = vand.u32 %v788, 65535
    %v1074 = vshra.s32 %v788, 16
    %v1075 = vcvt.s32.f32 %v1073
    %v1076 = vcvt.s32.f32 %v1074
    %1077 = vmin.xlane.f32.xlu0 %v1076
    %v1078 = vpop.xlane.xlu0 %1077
    %vm1079 = vcmp.eq.f32.partialorder %v1076, %v1078
    %v1080 = vsel %vm1079, %v1075, inf
    %1081 = vmin.xlane.f32.xlu0 %v1080
    %v1082 = vpop.xlane.xlu0 %1081
    %v1083 = vcvt.f32.s32 %v1082
    %v1084 = vcvt.f32.s32 %v1078
    %v1085 = vshll.u32 %v1084, 16
    %v1086 = vadd.s32 %v1085, %v1083
    %v1087 = vand.u32 %v789, 65535
    %v1088 = vshra.s32 %v789, 16
    %v1089 = vcvt.s32.f32 %v1087
    %v1090 = vcvt.s32.f32 %v1088
    %1091 = vmin.xlane.f32.xlu0 %v1090
    %v1092 = vpop.xlane.xlu0 %1091
    %vm1093 = vcmp.eq.f32.partialorder %v1090, %v1092
    %v1094 = vsel %vm1093, %v1089, inf
    %1095 = vmin.xlane.f32.xlu0 %v1094
    %v1096 = vpop.xlane.xlu0 %1095
    %v1097 = vcvt.f32.s32 %v1096
    %v1098 = vcvt.f32.s32 %v1092
    %v1099 = vshll.u32 %v1098, 16
    %v1100 = vadd.s32 %v1099, %v1097
    %v1101 = vand.u32 %v790, 65535
    %v1102 = vshra.s32 %v790, 16
    %v1103 = vcvt.s32.f32 %v1101
    %v1104 = vcvt.s32.f32 %v1102
    %1105 = vmin.xlane.f32.xlu0 %v1104
    %v1106 = vpop.xlane.xlu0 %1105
    %vm1107 = vcmp.eq.f32.partialorder %v1104, %v1106
    %v1108 = vsel %vm1107, %v1103, inf
    %1109 = vmin.xlane.f32.xlu0 %v1108
    %v1110 = vpop.xlane.xlu0 %1109
    %v1111 = vcvt.f32.s32 %v1110
    %v1112 = vcvt.f32.s32 %v1106
    %v1113 = vshll.u32 %v1112, 16
    %v1114 = vadd.s32 %v1113, %v1111
    %v1115 = vand.u32 %v791, 65535
    %v1116 = vshra.s32 %v791, 16
    %v1117 = vcvt.s32.f32 %v1115
    %v1118 = vcvt.s32.f32 %v1116
    %1119 = vmin.xlane.f32.xlu0 %v1118
    %v1120 = vpop.xlane.xlu0 %1119
    %vm1121 = vcmp.eq.f32.partialorder %v1118, %v1120
    %v1122 = vsel %vm1121, %v1117, inf
    %1123 = vmin.xlane.f32.xlu0 %v1122
    %v1124 = vpop.xlane.xlu0 %1123
    %v1125 = vcvt.f32.s32 %v1124
    %v1126 = vcvt.f32.s32 %v1120
    %v1127 = vshll.u32 %v1126, 16
    %v1128 = vadd.s32 %v1127, %v1125
    %v1129 = vand.u32 %v792, 65535
    %v1130 = vshra.s32 %v792, 16
    %v1131 = vcvt.s32.f32 %v1129
    %v1132 = vcvt.s32.f32 %v1130
    %1133 = vmin.xlane.f32.xlu0 %v1132
    %v1134 = vpop.xlane.xlu0 %1133
    %vm1135 = vcmp.eq.f32.partialorder %v1132, %v1134
    %v1136 = vsel %vm1135, %v1131, inf
    %1137 = vmin.xlane.f32.xlu0 %v1136
    %v1138 = vpop.xlane.xlu0 %1137
    %v1139 = vcvt.f32.s32 %v1138
    %v1140 = vcvt.f32.s32 %v1134
    %v1141 = vshll.u32 %v1140, 16
    %v1142 = vadd.s32 %v1141, %v1139
    %v1143 = vand.u32 %v793, 65535
    %v1144 = vshra.s32 %v793, 16
    %v1145 = vcvt.s32.f32 %v1143
    %v1146 = vcvt.s32.f32 %v1144
    %1147 = vmin.xlane.f32.xlu0 %v1146
    %v1148 = vpop.xlane.xlu0 %1147
    %vm1149 = vcmp.eq.f32.partialorder %v1146, %v1148
    %v1150 = vsel %vm1149, %v1145, inf
    %1151 = vmin.xlane.f32.xlu0 %v1150
    %v1152 = vpop.xlane.xlu0 %1151
    %v1153 = vcvt.f32.s32 %v1152
    %v1154 = vcvt.f32.s32 %v1148
    %v1155 = vshll.u32 %v1154, 16
    %v1156 = vadd.s32 %v1155, %v1153
    %v1157 = vand.u32 %v794, 65535
    %v1158 = vshra.s32 %v794, 16
    %v1159 = vcvt.s32.f32 %v1157
    %v1160 = vcvt.s32.f32 %v1158
    %1161 = vmin.xlane.f32.xlu0 %v1160
    %v1162 = vpop.xlane.xlu0 %1161
    %vm1163 = vcmp.eq.f32.partialorder %v1160, %v1162
    %v1164 = vsel %vm1163, %v1159, inf
    %1165 = vmin.xlane.f32.xlu0 %v1164
    %v1166 = vpop.xlane.xlu0 %1165
    %v1167 = vcvt.f32.s32 %v1166
    %v1168 = vcvt.f32.s32 %v1162
    %v1169 = vshll.u32 %v1168, 16
    %v1170 = vadd.s32 %v1169, %v1167
    %v1171 = vand.u32 %v795, 65535
    %v1172 = vshra.s32 %v795, 16
    %v1173 = vcvt.s32.f32 %v1171
    %v1174 = vcvt.s32.f32 %v1172
    %1175 = vmin.xlane.f32.xlu0 %v1174
    %v1176 = vpop.xlane.xlu0 %1175
    %vm1177 = vcmp.eq.f32.partialorder %v1174, %v1176
    %v1178 = vsel %vm1177, %v1173, inf
    %1179 = vmin.xlane.f32.xlu0 %v1178
    %v1180 = vpop.xlane.xlu0 %1179
    %v1181 = vcvt.f32.s32 %v1180
    %v1182 = vcvt.f32.s32 %v1176
    %v1183 = vshll.u32 %v1182, 16
    %v1184 = vadd.s32 %v1183, %v1181
    %v1185 = vand.u32 %v796, 65535
    %v1186 = vshra.s32 %v796, 16
    %v1187 = vcvt.s32.f32 %v1185
    %v1188 = vcvt.s32.f32 %v1186
    %1189 = vmin.xlane.f32.xlu0 %v1188
    %v1190 = vpop.xlane.xlu0 %1189
    %vm1191 = vcmp.eq.f32.partialorder %v1188, %v1190
    %v1192 = vsel %vm1191, %v1187, inf
    %1193 = vmin.xlane.f32.xlu0 %v1192
    %v1194 = vpop.xlane.xlu0 %1193
    %v1195 = vcvt.f32.s32 %v1194
    %v1196 = vcvt.f32.s32 %v1190
    %v1197 = vshll.u32 %v1196, 16
    %v1198 = vadd.s32 %v1197, %v1195
    %v1199 = vand.u32 %v797, 65535
    %v1200 = vshra.s32 %v797, 16
    %v1201 = vcvt.s32.f32 %v1199
    %v1202 = vcvt.s32.f32 %v1200
    %1203 = vmin.xlane.f32.xlu0 %v1202
    %v1204 = vpop.xlane.xlu0 %1203
    %vm1205 = vcmp.eq.f32.partialorder %v1202, %v1204
    %v1206 = vsel %vm1205, %v1201, inf
    %1207 = vmin.xlane.f32.xlu0 %v1206
    %v1208 = vpop.xlane.xlu0 %1207
    %v1209 = vcvt.f32.s32 %v1208
    %v1210 = vcvt.f32.s32 %v1204
    %v1211 = vshll.u32 %v1210, 16
    %v1212 = vadd.s32 %v1211, %v1209
    %v1213 = vand.u32 %v798, 65535
    %v1214 = vshra.s32 %v798, 16
    %v1215 = vcvt.s32.f32 %v1213
    %v1216 = vcvt.s32.f32 %v1214
    %1217 = vmin.xlane.f32.xlu0 %v1216
    %v1218 = vpop.xlane.xlu0 %1217
    %vm1219 = vcmp.eq.f32.partialorder %v1216, %v1218
    %v1220 = vsel %vm1219, %v1215, inf
    %1221 = vmin.xlane.f32.xlu0 %v1220
    %v1222 = vpop.xlane.xlu0 %1221
    %v1223 = vcvt.f32.s32 %v1222
    %v1224 = vcvt.f32.s32 %v1218
    %v1225 = vshll.u32 %v1224, 16
    %v1226 = vadd.s32 %v1225, %v1223
    %v1227 = vand.u32 %v799, 65535
    %v1228 = vshra.s32 %v799, 16
    %v1229 = vcvt.s32.f32 %v1227
    %v1230 = vcvt.s32.f32 %v1228
    %1231 = vmin.xlane.f32.xlu0 %v1230
    %v1232 = vpop.xlane.xlu0 %1231
    %vm1233 = vcmp.eq.f32.partialorder %v1230, %v1232
    %v1234 = vsel %vm1233, %v1229, inf
    %1235 = vmin.xlane.f32.xlu0 %v1234
    %v1236 = vpop.xlane.xlu0 %1235
    %v1237 = vcvt.f32.s32 %v1236
    %v1238 = vcvt.f32.s32 %v1232
    %v1239 = vshll.u32 %v1238, 16
    %v1240 = vadd.s32 %v1239, %v1237
    %v1241 = vand.u32 %v800, 65535
    %v1242 = vshra.s32 %v800, 16
    %v1243 = vcvt.s32.f32 %v1241
    %v1244 = vcvt.s32.f32 %v1242
    %1245 = vmin.xlane.f32.xlu0 %v1244
    %v1246 = vpop.xlane.xlu0 %1245
    %vm1247 = vcmp.eq.f32.partialorder %v1244, %v1246
    %v1248 = vsel %vm1247, %v1243, inf
    %1249 = vmin.xlane.f32.xlu0 %v1248
    %v1250 = vpop.xlane.xlu0 %1249
    %v1251 = vcvt.f32.s32 %v1250
    %v1252 = vcvt.f32.s32 %v1246
    %v1253 = vshll.u32 %v1252, 16
    %v1254 = vadd.s32 %v1253, %v1251
    %v1255 = vand.u32 %v801, 65535
    %v1256 = vshra.s32 %v801, 16
    %v1257 = vcvt.s32.f32 %v1255
    %v1258 = vcvt.s32.f32 %v1256
    %1259 = vmin.xlane.f32.xlu0 %v1258
    %v1260 = vpop.xlane.xlu0 %1259
    %vm1261 = vcmp.eq.f32.partialorder %v1258, %v1260
    %v1262 = vsel %vm1261, %v1257, inf
    %1263 = vmin.xlane.f32.xlu0 %v1262
    %v1264 = vpop.xlane.xlu0 %1263
    %v1265 = vcvt.f32.s32 %v1264
    %v1266 = vcvt.f32.s32 %v1260
    %v1267 = vshll.u32 %v1266, 16
    %v1268 = vadd.s32 %v1267, %v1265
    %v1269 = vand.u32 %v802, 65535
    %v1270 = vshra.s32 %v802, 16
    %v1271 = vcvt.s32.f32 %v1269
    %v1272 = vcvt.s32.f32 %v1270
    %1273 = vmin.xlane.f32.xlu0 %v1272
    %v1274 = vpop.xlane.xlu0 %1273
    %vm1275 = vcmp.eq.f32.partialorder %v1272, %v1274
    %v1276 = vsel %vm1275, %v1271, inf
    %1277 = vmin.xlane.f32.xlu0 %v1276
    %v1278 = vpop.xlane.xlu0 %1277
    %v1279 = vcvt.f32.s32 %v1278
    %v1280 = vcvt.f32.s32 %v1274
    %v1281 = vshll.u32 %v1280, 16
    %v1282 = vadd.s32 %v1281, %v1279
    %v1283 = vand.u32 %v803, 65535
    %v1284 = vshra.s32 %v803, 16
    %v1285 = vcvt.s32.f32 %v1283
    %v1286 = vcvt.s32.f32 %v1284
    %1287 = vmin.xlane.f32.xlu0 %v1286
    %v1288 = vpop.xlane.xlu0 %1287
    %vm1289 = vcmp.eq.f32.partialorder %v1286, %v1288
    %v1290 = vsel %vm1289, %v1285, inf
    %1291 = vmin.xlane.f32.xlu0 %v1290
    %v1292 = vpop.xlane.xlu0 %1291
    %v1293 = vcvt.f32.s32 %v1292
    %v1294 = vcvt.f32.s32 %v1288
    %v1295 = vshll.u32 %v1294, 16
    %v1296 = vadd.s32 %v1295, %v1293
    %v1297 = vand.u32 %v804, 65535
    %v1298 = vshra.s32 %v804, 16
    %v1299 = vcvt.s32.f32 %v1297
    %v1300 = vcvt.s32.f32 %v1298
    %1301 = vmin.xlane.f32.xlu0 %v1300
    %v1302 = vpop.xlane.xlu0 %1301
    %vm1303 = vcmp.eq.f32.partialorder %v1300, %v1302
    %v1304 = vsel %vm1303, %v1299, inf
    %1305 = vmin.xlane.f32.xlu0 %v1304
    %v1306 = vpop.xlane.xlu0 %1305
    %v1307 = vcvt.f32.s32 %v1306
    %v1308 = vcvt.f32.s32 %v1302
    %v1309 = vshll.u32 %v1308, 16
    %v1310 = vadd.s32 %v1309, %v1307
    %v1311 = vand.u32 %v805, 65535
    %v1312 = vshra.s32 %v805, 16
    %v1313 = vcvt.s32.f32 %v1311
    %v1314 = vcvt.s32.f32 %v1312
    %1315 = vmin.xlane.f32.xlu0 %v1314
    %v1316 = vpop.xlane.xlu0 %1315
    %vm1317 = vcmp.eq.f32.partialorder %v1314, %v1316
    %v1318 = vsel %vm1317, %v1313, inf
    %1319 = vmin.xlane.f32.xlu0 %v1318
    %v1320 = vpop.xlane.xlu0 %1319
    %v1321 = vcvt.f32.s32 %v1320
    %v1322 = vcvt.f32.s32 %v1316
    %v1323 = vshll.u32 %v1322, 16
    %v1324 = vadd.s32 %v1323, %v1321
    %v1325 = vand.u32 %v806, 65535
    %v1326 = vshra.s32 %v806, 16
    %v1327 = vcvt.s32.f32 %v1325
    %v1328 = vcvt.s32.f32 %v1326
    %1329 = vmin.xlane.f32.xlu0 %v1328
    %v1330 = vpop.xlane.xlu0 %1329
    %vm1331 = vcmp.eq.f32.partialorder %v1328, %v1330
    %v1332 = vsel %vm1331, %v1327, inf
    %1333 = vmin.xlane.f32.xlu0 %v1332
    %v1334 = vpop.xlane.xlu0 %1333
    %v1335 = vcvt.f32.s32 %v1334
    %v1336 = vcvt.f32.s32 %v1330
    %v1337 = vshll.u32 %v1336, 16
    %v1338 = vadd.s32 %v1337, %v1335
    %v1339 = vand.u32 %v807, 65535
    %v1340 = vshra.s32 %v807, 16
    %v1341 = vcvt.s32.f32 %v1339
    %v1342 = vcvt.s32.f32 %v1340
    %1343 = vmin.xlane.f32.xlu0 %v1342
    %v1344 = vpop.xlane.xlu0 %1343
    %vm1345 = vcmp.eq.f32.partialorder %v1342, %v1344
    %v1346 = vsel %vm1345, %v1341, inf
    %1347 = vmin.xlane.f32.xlu0 %v1346
    %v1348 = vpop.xlane.xlu0 %1347
    %v1349 = vcvt.f32.s32 %v1348
    %v1350 = vcvt.f32.s32 %v1344
    %v1351 = vshll.u32 %v1350, 16
    %v1352 = vadd.s32 %v1351, %v1349
    %v1353 = vand.u32 %v808, 65535
    %v1354 = vshra.s32 %v808, 16
    %v1355 = vcvt.s32.f32 %v1353
    %v1356 = vcvt.s32.f32 %v1354
    %1357 = vmin.xlane.f32.xlu0 %v1356
    %v1358 = vpop.xlane.xlu0 %1357
    %vm1359 = vcmp.eq.f32.partialorder %v1356, %v1358
    %v1360 = vsel %vm1359, %v1355, inf
    %1361 = vmin.xlane.f32.xlu0 %v1360
    %v1362 = vpop.xlane.xlu0 %1361
    %v1363 = vcvt.f32.s32 %v1362
    %v1364 = vcvt.f32.s32 %v1358
    %v1365 = vshll.u32 %v1364, 16
    %v1366 = vadd.s32 %v1365, %v1363
    %v1367 = vand.u32 %v809, 65535
    %v1368 = vshra.s32 %v809, 16
    %v1369 = vcvt.s32.f32 %v1367
    %v1370 = vcvt.s32.f32 %v1368
    %1371 = vmin.xlane.f32.xlu0 %v1370
    %v1372 = vpop.xlane.xlu0 %1371
    %vm1373 = vcmp.eq.f32.partialorder %v1370, %v1372
    %v1374 = vsel %vm1373, %v1369, inf
    %1375 = vmin.xlane.f32.xlu0 %v1374
    %v1376 = vpop.xlane.xlu0 %1375
    %v1377 = vcvt.f32.s32 %v1376
    %v1378 = vcvt.f32.s32 %v1372
    %v1379 = vshll.u32 %v1378, 16
    %v1380 = vadd.s32 %v1379, %v1377
    %v1381 = vand.u32 %v810, 65535
    %v1382 = vshra.s32 %v810, 16
    %v1383 = vcvt.s32.f32 %v1381
    %v1384 = vcvt.s32.f32 %v1382
    %1385 = vmin.xlane.f32.xlu0 %v1384
    %v1386 = vpop.xlane.xlu0 %1385
    %vm1387 = vcmp.eq.f32.partialorder %v1384, %v1386
    %v1388 = vsel %vm1387, %v1383, inf
    %1389 = vmin.xlane.f32.xlu0 %v1388
    %v1390 = vpop.xlane.xlu0 %1389
    %v1391 = vcvt.f32.s32 %v1390
    %v1392 = vcvt.f32.s32 %v1386
    %v1393 = vshll.u32 %v1392, 16
    %v1394 = vadd.s32 %v1393, %v1391
    %v1395 = vand.u32 %v811, 65535
    %v1396 = vshra.s32 %v811, 16
    %v1397 = vcvt.s32.f32 %v1395
    %v1398 = vcvt.s32.f32 %v1396
    %1399 = vmin.xlane.f32.xlu0 %v1398
    %v1400 = vpop.xlane.xlu0 %1399
    %vm1401 = vcmp.eq.f32.partialorder %v1398, %v1400
    %v1402 = vsel %vm1401, %v1397, inf
    %1403 = vmin.xlane.f32.xlu0 %v1402
    %v1404 = vpop.xlane.xlu0 %1403
    %v1405 = vcvt.f32.s32 %v1404
    %v1406 = vcvt.f32.s32 %v1400
    %v1407 = vshll.u32 %v1406, 16
    %v1408 = vadd.s32 %v1407, %v1405
    %v1409 = vand.u32 %v812, 65535
    %v1410 = vshra.s32 %v812, 16
    %v1411 = vcvt.s32.f32 %v1409
    %v1412 = vcvt.s32.f32 %v1410
    %1413 = vmin.xlane.f32.xlu0 %v1412
    %v1414 = vpop.xlane.xlu0 %1413
    %vm1415 = vcmp.eq.f32.partialorder %v1412, %v1414
    %v1416 = vsel %vm1415, %v1411, inf
    %1417 = vmin.xlane.f32.xlu0 %v1416
    %v1418 = vpop.xlane.xlu0 %1417
    %v1419 = vcvt.f32.s32 %v1418
    %v1420 = vcvt.f32.s32 %v1414
    %v1421 = vshll.u32 %v1420, 16
    %v1422 = vadd.s32 %v1421, %v1419
    %v1423 = vand.u32 %v813, 65535
    %v1424 = vshra.s32 %v813, 16
    %v1425 = vcvt.s32.f32 %v1423
    %v1426 = vcvt.s32.f32 %v1424
    %1427 = vmin.xlane.f32.xlu0 %v1426
    %v1428 = vpop.xlane.xlu0 %1427
    %vm1429 = vcmp.eq.f32.partialorder %v1426, %v1428
    %v1430 = vsel %vm1429, %v1425, inf
    %1431 = vmin.xlane.f32.xlu0 %v1430
    %v1432 = vpop.xlane.xlu0 %1431
    %v1433 = vcvt.f32.s32 %v1432
    %v1434 = vcvt.f32.s32 %v1428
    %v1435 = vshll.u32 %v1434, 16
    %v1436 = vadd.s32 %v1435, %v1433
    %v1437 = vand.u32 %v814, 65535
    %v1438 = vshra.s32 %v814, 16
    %v1439 = vcvt.s32.f32 %v1437
    %v1440 = vcvt.s32.f32 %v1438
    %1441 = vmin.xlane.f32.xlu0 %v1440
    %v1442 = vpop.xlane.xlu0 %1441
    %vm1443 = vcmp.eq.f32.partialorder %v1440, %v1442
    %v1444 = vsel %vm1443, %v1439, inf
    %1445 = vmin.xlane.f32.xlu0 %v1444
    %v1446 = vpop.xlane.xlu0 %1445
    %v1447 = vcvt.f32.s32 %v1446
    %v1448 = vcvt.f32.s32 %v1442
    %v1449 = vshll.u32 %v1448, 16
    %v1450 = vadd.s32 %v1449, %v1447
    %v1451 = vand.u32 %v815, 65535
    %v1452 = vshra.s32 %v815, 16
    %v1453 = vcvt.s32.f32 %v1451
    %v1454 = vcvt.s32.f32 %v1452
    %1455 = vmin.xlane.f32.xlu0 %v1454
    %v1456 = vpop.xlane.xlu0 %1455
    %vm1457 = vcmp.eq.f32.partialorder %v1454, %v1456
    %v1458 = vsel %vm1457, %v1453, inf
    %1459 = vmin.xlane.f32.xlu0 %v1458
    %v1460 = vpop.xlane.xlu0 %1459
    %v1461 = vcvt.f32.s32 %v1460
    %v1462 = vcvt.f32.s32 %v1456
    %v1463 = vshll.u32 %v1462, 16
    %v1464 = vadd.s32 %v1463, %v1461
    %v1465 = vand.u32 %v816, 65535
    %v1466 = vshra.s32 %v816, 16
    %v1467 = vcvt.s32.f32 %v1465
    %v1468 = vcvt.s32.f32 %v1466
    %1469 = vmin.xlane.f32.xlu0 %v1468
    %v1470 = vpop.xlane.xlu0 %1469
    %vm1471 = vcmp.eq.f32.partialorder %v1468, %v1470
    %v1472 = vsel %vm1471, %v1467, inf
    %1473 = vmin.xlane.f32.xlu0 %v1472
    %v1474 = vpop.xlane.xlu0 %1473
    %v1475 = vcvt.f32.s32 %v1474
    %v1476 = vcvt.f32.s32 %v1470
    %v1477 = vshll.u32 %v1476, 16
    %v1478 = vadd.s32 %v1477, %v1475
    %v1479 = vand.u32 %v817, 65535
    %v1480 = vshra.s32 %v817, 16
    %v1481 = vcvt.s32.f32 %v1479
    %v1482 = vcvt.s32.f32 %v1480
    %1483 = vmin.xlane.f32.xlu0 %v1482
    %v1484 = vpop.xlane.xlu0 %1483
    %vm1485 = vcmp.eq.f32.partialorder %v1482, %v1484
    %v1486 = vsel %vm1485, %v1481, inf
    %1487 = vmin.xlane.f32.xlu0 %v1486
    %v1488 = vpop.xlane.xlu0 %1487
    %v1489 = vcvt.f32.s32 %v1488
    %v1490 = vcvt.f32.s32 %v1484
    %v1491 = vshll.u32 %v1490, 16
    %v1492 = vadd.s32 %v1491, %v1489
    %v1493 = vand.u32 %v818, 65535
    %v1494 = vshra.s32 %v818, 16
    %v1495 = vcvt.s32.f32 %v1493
    %v1496 = vcvt.s32.f32 %v1494
    %1497 = vmin.xlane.f32.xlu0 %v1496
    %v1498 = vpop.xlane.xlu0 %1497
    %vm1499 = vcmp.eq.f32.partialorder %v1496, %v1498
    %v1500 = vsel %vm1499, %v1495, inf
    %1501 = vmin.xlane.f32.xlu0 %v1500
    %v1502 = vpop.xlane.xlu0 %1501
    %v1503 = vcvt.f32.s32 %v1502
    %v1504 = vcvt.f32.s32 %v1498
    %v1505 = vshll.u32 %v1504, 16
    %v1506 = vadd.s32 %v1505, %v1503
    %v1507 = vand.u32 %v819, 65535
    %v1508 = vshra.s32 %v819, 16
    %v1509 = vcvt.s32.f32 %v1507
    %v1510 = vcvt.s32.f32 %v1508
    %1511 = vmin.xlane.f32.xlu0 %v1510
    %v1512 = vpop.xlane.xlu0 %1511
    %vm1513 = vcmp.eq.f32.partialorder %v1510, %v1512
    %v1514 = vsel %vm1513, %v1509, inf
    %1515 = vmin.xlane.f32.xlu0 %v1514
    %v1516 = vpop.xlane.xlu0 %1515
    %v1517 = vcvt.f32.s32 %v1516
    %v1518 = vcvt.f32.s32 %v1512
    %v1519 = vshll.u32 %v1518, 16
    %v1520 = vadd.s32 %v1519, %v1517
    %v1521 = vand.u32 %v820, 65535
    %v1522 = vshra.s32 %v820, 16
    %v1523 = vcvt.s32.f32 %v1521
    %v1524 = vcvt.s32.f32 %v1522
    %1525 = vmin.xlane.f32.xlu0 %v1524
    %v1526 = vpop.xlane.xlu0 %1525
    %vm1527 = vcmp.eq.f32.partialorder %v1524, %v1526
    %v1528 = vsel %vm1527, %v1523, inf
    %1529 = vmin.xlane.f32.xlu0 %v1528
    %v1530 = vpop.xlane.xlu0 %1529
    %v1531 = vcvt.f32.s32 %v1530
    %v1532 = vcvt.f32.s32 %v1526
    %v1533 = vshll.u32 %v1532, 16
    %v1534 = vadd.s32 %v1533, %v1531
    %v1535 = vand.u32 %v821, 65535
    %v1536 = vshra.s32 %v821, 16
    %v1537 = vcvt.s32.f32 %v1535
    %v1538 = vcvt.s32.f32 %v1536
    %1539 = vmin.xlane.f32.xlu0 %v1538
    %v1540 = vpop.xlane.xlu0 %1539
    %vm1541 = vcmp.eq.f32.partialorder %v1538, %v1540
    %v1542 = vsel %vm1541, %v1537, inf
    %1543 = vmin.xlane.f32.xlu0 %v1542
    %v1544 = vpop.xlane.xlu0 %1543
    %v1545 = vcvt.f32.s32 %v1544
    %v1546 = vcvt.f32.s32 %v1540
    %v1547 = vshll.u32 %v1546, 16
    %v1548 = vadd.s32 %v1547, %v1545
    %v1549 = vand.u32 %v822, 65535
    %v1550 = vshra.s32 %v822, 16
    %v1551 = vcvt.s32.f32 %v1549
    %v1552 = vcvt.s32.f32 %v1550
    %1553 = vmin.xlane.f32.xlu0 %v1552
    %v1554 = vpop.xlane.xlu0 %1553
    %vm1555 = vcmp.eq.f32.partialorder %v1552, %v1554
    %v1556 = vsel %vm1555, %v1551, inf
    %1557 = vmin.xlane.f32.xlu0 %v1556
    %v1558 = vpop.xlane.xlu0 %1557
    %v1559 = vcvt.f32.s32 %v1558
    %v1560 = vcvt.f32.s32 %v1554
    %v1561 = vshll.u32 %v1560, 16
    %v1562 = vadd.s32 %v1561, %v1559
    %v1563 = vand.u32 %v823, 65535
    %v1564 = vshra.s32 %v823, 16
    %v1565 = vcvt.s32.f32 %v1563
    %v1566 = vcvt.s32.f32 %v1564
    %1567 = vmin.xlane.f32.xlu0 %v1566
    %v1568 = vpop.xlane.xlu0 %1567
    %vm1569 = vcmp.eq.f32.partialorder %v1566, %v1568
    %v1570 = vsel %vm1569, %v1565, inf
    %1571 = vmin.xlane.f32.xlu0 %v1570
    %v1572 = vpop.xlane.xlu0 %1571
    %v1573 = vcvt.f32.s32 %v1572
    %v1574 = vcvt.f32.s32 %v1568
    %v1575 = vshll.u32 %v1574, 16
    %v1576 = vadd.s32 %v1575, %v1573
    %v1577 = vand.u32 %v824, 65535
    %v1578 = vshra.s32 %v824, 16
    %v1579 = vcvt.s32.f32 %v1577
    %v1580 = vcvt.s32.f32 %v1578
    %1581 = vmin.xlane.f32.xlu0 %v1580
    %v1582 = vpop.xlane.xlu0 %1581
    %vm1583 = vcmp.eq.f32.partialorder %v1580, %v1582
    %v1584 = vsel %vm1583, %v1579, inf
    %1585 = vmin.xlane.f32.xlu0 %v1584
    %v1586 = vpop.xlane.xlu0 %1585
    %v1587 = vcvt.f32.s32 %v1586
    %v1588 = vcvt.f32.s32 %v1582
    %v1589 = vshll.u32 %v1588, 16
    %v1590 = vadd.s32 %v1589, %v1587
    %v1591 = vand.u32 %v825, 65535
    %v1592 = vshra.s32 %v825, 16
    %v1593 = vcvt.s32.f32 %v1591
    %v1594 = vcvt.s32.f32 %v1592
    %1595 = vmin.xlane.f32.xlu0 %v1594
    %v1596 = vpop.xlane.xlu0 %1595
    %vm1597 = vcmp.eq.f32.partialorder %v1594, %v1596
    %v1598 = vsel %vm1597, %v1593, inf
    %1599 = vmin.xlane.f32.xlu0 %v1598
    %v1600 = vpop.xlane.xlu0 %1599
    %v1601 = vcvt.f32.s32 %v1600
    %v1602 = vcvt.f32.s32 %v1596
    %v1603 = vshll.u32 %v1602, 16
    %v1604 = vadd.s32 %v1603, %v1601
    %v1605 = vand.u32 %v826, 65535
    %v1606 = vshra.s32 %v826, 16
    %v1607 = vcvt.s32.f32 %v1605
    %v1608 = vcvt.s32.f32 %v1606
    %1609 = vmin.xlane.f32.xlu0 %v1608
    %v1610 = vpop.xlane.xlu0 %1609
    %vm1611 = vcmp.eq.f32.partialorder %v1608, %v1610
    %v1612 = vsel %vm1611, %v1607, inf
    %1613 = vmin.xlane.f32.xlu0 %v1612
    %v1614 = vpop.xlane.xlu0 %1613
    %v1615 = vcvt.f32.s32 %v1614
    %v1616 = vcvt.f32.s32 %v1610
    %v1617 = vshll.u32 %v1616, 16
    %v1618 = vadd.s32 %v1617, %v1615
    %v1619 = vand.u32 %v827, 65535
    %v1620 = vshra.s32 %v827, 16
    %v1621 = vcvt.s32.f32 %v1619
    %v1622 = vcvt.s32.f32 %v1620
    %1623 = vmin.xlane.f32.xlu0 %v1622
    %v1624 = vpop.xlane.xlu0 %1623
    %vm1625 = vcmp.eq.f32.partialorder %v1622, %v1624
    %v1626 = vsel %vm1625, %v1621, inf
    %1627 = vmin.xlane.f32.xlu0 %v1626
    %v1628 = vpop.xlane.xlu0 %1627
    %v1629 = vcvt.f32.s32 %v1628
    %v1630 = vcvt.f32.s32 %v1624
    %v1631 = vshll.u32 %v1630, 16
    %v1632 = vadd.s32 %v1631, %v1629
    %v1633 = vand.u32 %v828, 65535
    %v1634 = vshra.s32 %v828, 16
    %v1635 = vcvt.s32.f32 %v1633
    %v1636 = vcvt.s32.f32 %v1634
    %1637 = vmin.xlane.f32.xlu0 %v1636
    %v1638 = vpop.xlane.xlu0 %1637
    %vm1639 = vcmp.eq.f32.partialorder %v1636, %v1638
    %v1640 = vsel %vm1639, %v1635, inf
    %1641 = vmin.xlane.f32.xlu0 %v1640
    %v1642 = vpop.xlane.xlu0 %1641
    %v1643 = vcvt.f32.s32 %v1642
    %v1644 = vcvt.f32.s32 %v1638
    %v1645 = vshll.u32 %v1644, 16
    %v1646 = vadd.s32 %v1645, %v1643
    %v1647 = vand.u32 %v829, 65535
    %v1648 = vshra.s32 %v829, 16
    %v1649 = vcvt.s32.f32 %v1647
    %v1650 = vcvt.s32.f32 %v1648
    %1651 = vmin.xlane.f32.xlu0 %v1650
    %v1652 = vpop.xlane.xlu0 %1651
    %vm1653 = vcmp.eq.f32.partialorder %v1650, %v1652
    %v1654 = vsel %vm1653, %v1649, inf
    %1655 = vmin.xlane.f32.xlu0 %v1654
    %v1656 = vpop.xlane.xlu0 %1655
    %v1657 = vcvt.f32.s32 %v1656
    %v1658 = vcvt.f32.s32 %v1652
    %v1659 = vshll.u32 %v1658, 16
    %v1660 = vadd.s32 %v1659, %v1657
    %v1661 = vand.u32 %v830, 65535
    %v1662 = vshra.s32 %v830, 16
    %v1663 = vcvt.s32.f32 %v1661
    %v1664 = vcvt.s32.f32 %v1662
    %1665 = vmin.xlane.f32.xlu0 %v1664
    %v1666 = vpop.xlane.xlu0 %1665
    %vm1667 = vcmp.eq.f32.partialorder %v1664, %v1666
    %v1668 = vsel %vm1667, %v1663, inf
    %1669 = vmin.xlane.f32.xlu0 %v1668
    %v1670 = vpop.xlane.xlu0 %1669
    %v1671 = vcvt.f32.s32 %v1670
    %v1672 = vcvt.f32.s32 %v1666
    %v1673 = vshll.u32 %v1672, 16
    %v1674 = vadd.s32 %v1673, %v1671
    %v1675 = vand.u32 %v831, 65535
    %v1676 = vshra.s32 %v831, 16
    %v1677 = vcvt.s32.f32 %v1675
    %v1678 = vcvt.s32.f32 %v1676
    %1679 = vmin.xlane.f32.xlu0 %v1678
    %v1680 = vpop.xlane.xlu0 %1679
    %vm1681 = vcmp.eq.f32.partialorder %v1678, %v1680
    %v1682 = vsel %vm1681, %v1677, inf
    %1683 = vmin.xlane.f32.xlu0 %v1682
    %v1684 = vpop.xlane.xlu0 %1683
    %v1685 = vcvt.f32.s32 %v1684
    %v1686 = vcvt.f32.s32 %v1680
    %v1687 = vshll.u32 %v1686, 16
    %v1688 = vadd.s32 %v1687, %v1685
    %v1689 = vand.u32 %v832, 65535
    %v1690 = vshra.s32 %v832, 16
    %v1691 = vcvt.s32.f32 %v1689
    %v1692 = vcvt.s32.f32 %v1690
    %1693 = vmin.xlane.f32.xlu0 %v1692
    %v1694 = vpop.xlane.xlu0 %1693
    %vm1695 = vcmp.eq.f32.partialorder %v1692, %v1694
    %v1696 = vsel %vm1695, %v1691, inf
    %1697 = vmin.xlane.f32.xlu0 %v1696
    %v1698 = vpop.xlane.xlu0 %1697
    %v1699 = vcvt.f32.s32 %v1698
    %v1700 = vcvt.f32.s32 %v1694
    %v1701 = vshll.u32 %v1700, 16
    %v1702 = vadd.s32 %v1701, %v1699
    %v1703 = vand.u32 %v833, 65535
    %v1704 = vshra.s32 %v833, 16
    %v1705 = vcvt.s32.f32 %v1703
    %v1706 = vcvt.s32.f32 %v1704
    %1707 = vmin.xlane.f32.xlu0 %v1706
    %v1708 = vpop.xlane.xlu0 %1707
    %vm1709 = vcmp.eq.f32.partialorder %v1706, %v1708
    %v1710 = vsel %vm1709, %v1705, inf
    %1711 = vmin.xlane.f32.xlu0 %v1710
    %v1712 = vpop.xlane.xlu0 %1711
    %v1713 = vcvt.f32.s32 %v1712
    %v1714 = vcvt.f32.s32 %v1708
    %v1715 = vshll.u32 %v1714, 16
    %v1716 = vadd.s32 %v1715, %v1713
    %v1717 = vand.u32 %v834, 65535
    %v1718 = vshra.s32 %v834, 16
    %v1719 = vcvt.s32.f32 %v1717
    %v1720 = vcvt.s32.f32 %v1718
    %1721 = vmin.xlane.f32.xlu0 %v1720
    %v1722 = vpop.xlane.xlu0 %1721
    %vm1723 = vcmp.eq.f32.partialorder %v1720, %v1722
    %v1724 = vsel %vm1723, %v1719, inf
    %1725 = vmin.xlane.f32.xlu0 %v1724
    %v1726 = vpop.xlane.xlu0 %1725
    %v1727 = vcvt.f32.s32 %v1726
    %v1728 = vcvt.f32.s32 %v1722
    %v1729 = vshll.u32 %v1728, 16
    %v1730 = vadd.s32 %v1729, %v1727
    %vm1731 = vcmp.eq.s32.totalorder %v706, %v848
    %vm1732 = vcmp.eq.s32.totalorder %v706, %v862
    %vm1733 = vcmp.eq.s32.totalorder %v706, %v876
    %vm1734 = vcmp.eq.s32.totalorder %v706, %v890
    %vm1735 = vcmp.eq.s32.totalorder %v706, %v904
    %vm1736 = vcmp.eq.s32.totalorder %v706, %v918
    %vm1737 = vcmp.eq.s32.totalorder %v706, %v932
    %vm1738 = vcmp.eq.s32.totalorder %v706, %v946
    %vm1739 = vcmp.eq.s32.totalorder %v706, %v960
    %vm1740 = vcmp.eq.s32.totalorder %v706, %v974
    %vm1741 = vcmp.eq.s32.totalorder %v706, %v988
    %vm1742 = vcmp.eq.s32.totalorder %v706, %v1002
    %vm1743 = vcmp.eq.s32.totalorder %v706, %v1016
    %vm1744 = vcmp.eq.s32.totalorder %v706, %v1030
    %vm1745 = vcmp.eq.s32.totalorder %v706, %v1044
    %vm1746 = vcmp.eq.s32.totalorder %v706, %v1058
    %vm1747 = vcmp.eq.s32.totalorder %v706, %v1072
    %vm1748 = vcmp.eq.s32.totalorder %v706, %v1086
    %vm1749 = vcmp.eq.s32.totalorder %v706, %v1100
    %vm1750 = vcmp.eq.s32.totalorder %v706, %v1114
    %vm1751 = vcmp.eq.s32.totalorder %v706, %v1128
    %vm1752 = vcmp.eq.s32.totalorder %v706, %v1142
    %vm1753 = vcmp.eq.s32.totalorder %v706, %v1156
    %vm1754 = vcmp.eq.s32.totalorder %v706, %v1170
    %vm1755 = vcmp.eq.s32.totalorder %v706, %v1184
    %vm1756 = vcmp.eq.s32.totalorder %v706, %v1198
    %vm1757 = vcmp.eq.s32.totalorder %v706, %v1212
    %vm1758 = vcmp.eq.s32.totalorder %v706, %v1226
    %vm1759 = vcmp.eq.s32.totalorder %v706, %v1240
    %vm1760 = vcmp.eq.s32.totalorder %v706, %v1254
    %vm1761 = vcmp.eq.s32.totalorder %v706, %v1268
    %vm1762 = vcmp.eq.s32.totalorder %v706, %v1282
    %vm1763 = vcmp.eq.s32.totalorder %v706, %v1296
    %vm1764 = vcmp.eq.s32.totalorder %v706, %v1310
    %vm1765 = vcmp.eq.s32.totalorder %v706, %v1324
    %vm1766 = vcmp.eq.s32.totalorder %v706, %v1338
    %vm1767 = vcmp.eq.s32.totalorder %v706, %v1352
    %vm1768 = vcmp.eq.s32.totalorder %v706, %v1366
    %vm1769 = vcmp.eq.s32.totalorder %v706, %v1380
    %vm1770 = vcmp.eq.s32.totalorder %v706, %v1394
    %vm1771 = vcmp.eq.s32.totalorder %v706, %v1408
    %vm1772 = vcmp.eq.s32.totalorder %v706, %v1422
    %vm1773 = vcmp.eq.s32.totalorder %v706, %v1436
    %vm1774 = vcmp.eq.s32.totalorder %v706, %v1450
    %vm1775 = vcmp.eq.s32.totalorder %v706, %v1464
    %vm1776 = vcmp.eq.s32.totalorder %v706, %v1478
    %vm1777 = vcmp.eq.s32.totalorder %v706, %v1492
    %vm1778 = vcmp.eq.s32.totalorder %v706, %v1506
    %vm1779 = vcmp.eq.s32.totalorder %v706, %v1520
    %vm1780 = vcmp.eq.s32.totalorder %v706, %v1534
    %vm1781 = vcmp.eq.s32.totalorder %v706, %v1548
    %vm1782 = vcmp.eq.s32.totalorder %v706, %v1562
    %vm1783 = vcmp.eq.s32.totalorder %v706, %v1576
    %vm1784 = vcmp.eq.s32.totalorder %v706, %v1590
    %vm1785 = vcmp.eq.s32.totalorder %v706, %v1604
    %vm1786 = vcmp.eq.s32.totalorder %v706, %v1618
    %vm1787 = vcmp.eq.s32.totalorder %v706, %v1632
    %vm1788 = vcmp.eq.s32.totalorder %v706, %v1646
    %vm1789 = vcmp.eq.s32.totalorder %v706, %v1660
    %vm1790 = vcmp.eq.s32.totalorder %v706, %v1674
    %vm1791 = vcmp.eq.s32.totalorder %v706, %v1688
    %vm1792 = vcmp.eq.s32.totalorder %v706, %v1702
    %vm1793 = vcmp.eq.s32.totalorder %v706, %v1716
    %vm1794 = vcmp.eq.s32.totalorder %v706, %v1730
    %v1795 = vsel %vm1731, 1, 0
    %v1796 = vsel %vm1732, 1, 0
    %v1797 = vsel %vm1733, 1, 0
    %v1798 = vsel %vm1734, 1, 0
    %v1799 = vsel %vm1735, 1, 0
    %v1800 = vsel %vm1736, 1, 0
    %v1801 = vsel %vm1737, 1, 0
    %v1802 = vsel %vm1738, 1, 0
    %v1803 = vsel %vm1739, 1, 0
    %v1804 = vsel %vm1740, 1, 0
    %v1805 = vsel %vm1741, 1, 0
    %v1806 = vsel %vm1742, 1, 0
    %v1807 = vsel %vm1743, 1, 0
    %v1808 = vsel %vm1744, 1, 0
    %v1809 = vsel %vm1745, 1, 0
    %v1810 = vsel %vm1746, 1, 0
    %v1811 = vsel %vm1747, 1, 0
    %v1812 = vsel %vm1748, 1, 0
    %v1813 = vsel %vm1749, 1, 0
    %v1814 = vsel %vm1750, 1, 0
    %v1815 = vsel %vm1751, 1, 0
    %v1816 = vsel %vm1752, 1, 0
    %v1817 = vsel %vm1753, 1, 0
    %v1818 = vsel %vm1754, 1, 0
    %v1819 = vsel %vm1755, 1, 0
    %v1820 = vsel %vm1756, 1, 0
    %v1821 = vsel %vm1757, 1, 0
    %v1822 = vsel %vm1758, 1, 0
    %v1823 = vsel %vm1759, 1, 0
    %v1824 = vsel %vm1760, 1, 0
    %v1825 = vsel %vm1761, 1, 0
    %v1826 = vsel %vm1762, 1, 0
    %v1827 = vsel %vm1763, 1, 0
    %v1828 = vsel %vm1764, 1, 0
    %v1829 = vsel %vm1765, 1, 0
    %v1830 = vsel %vm1766, 1, 0
    %v1831 = vsel %vm1767, 1, 0
    %v1832 = vsel %vm1768, 1, 0
    %v1833 = vsel %vm1769, 1, 0
    %v1834 = vsel %vm1770, 1, 0
    %v1835 = vsel %vm1771, 1, 0
    %v1836 = vsel %vm1772, 1, 0
    %v1837 = vsel %vm1773, 1, 0
    %v1838 = vsel %vm1774, 1, 0
    %v1839 = vsel %vm1775, 1, 0
    %v1840 = vsel %vm1776, 1, 0
    %v1841 = vsel %vm1777, 1, 0
    %v1842 = vsel %vm1778, 1, 0
    %v1843 = vsel %vm1779, 1, 0
    %v1844 = vsel %vm1780, 1, 0
    %v1845 = vsel %vm1781, 1, 0
    %v1846 = vsel %vm1782, 1, 0
    %v1847 = vsel %vm1783, 1, 0
    %v1848 = vsel %vm1784, 1, 0
    %v1849 = vsel %vm1785, 1, 0
    %v1850 = vsel %vm1786, 1, 0
    %v1851 = vsel %vm1787, 1, 0
    %v1852 = vsel %vm1788, 1, 0
    %v1853 = vsel %vm1789, 1, 0
    %v1854 = vsel %vm1790, 1, 0
    %v1855 = vsel %vm1791, 1, 0
    %v1856 = vsel %vm1792, 1, 0
    %v1857 = vsel %vm1793, 1, 0
    %v1858 = vsel %vm1794, 1, 0
    %v1859 = vcvt.s32.f32 %v1795
    %v1860 = vcvt.s32.f32 %v1796
    %v1861 = vcvt.s32.f32 %v1797
    %v1862 = vcvt.s32.f32 %v1798
    %v1863 = vcvt.s32.f32 %v1799
    %v1864 = vcvt.s32.f32 %v1800
    %v1865 = vcvt.s32.f32 %v1801
    %v1866 = vcvt.s32.f32 %v1802
    %v1867 = vcvt.s32.f32 %v1803
    %v1868 = vcvt.s32.f32 %v1804
    %v1869 = vcvt.s32.f32 %v1805
    %v1870 = vcvt.s32.f32 %v1806
    %v1871 = vcvt.s32.f32 %v1807
    %v1872 = vcvt.s32.f32 %v1808
    %v1873 = vcvt.s32.f32 %v1809
    %v1874 = vcvt.s32.f32 %v1810
    %v1875 = vcvt.s32.f32 %v1811
    %v1876 = vcvt.s32.f32 %v1812
    %v1877 = vcvt.s32.f32 %v1813
    %v1878 = vcvt.s32.f32 %v1814
    %v1879 = vcvt.s32.f32 %v1815
    %v1880 = vcvt.s32.f32 %v1816
    %v1881 = vcvt.s32.f32 %v1817
    %v1882 = vcvt.s32.f32 %v1818
    %v1883 = vcvt.s32.f32 %v1819
    %v1884 = vcvt.s32.f32 %v1820
    %v1885 = vcvt.s32.f32 %v1821
    %v1886 = vcvt.s32.f32 %v1822
    %v1887 = vcvt.s32.f32 %v1823
    %v1888 = vcvt.s32.f32 %v1824
    %v1889 = vcvt.s32.f32 %v1825
    %v1890 = vcvt.s32.f32 %v1826
    %v1891 = vcvt.s32.f32 %v1827
    %v1892 = vcvt.s32.f32 %v1828
    %v1893 = vcvt.s32.f32 %v1829
    %v1894 = vcvt.s32.f32 %v1830
    %v1895 = vcvt.s32.f32 %v1831
    %v1896 = vcvt.s32.f32 %v1832
    %v1897 = vcvt.s32.f32 %v1833
    %v1898 = vcvt.s32.f32 %v1834
    %v1899 = vcvt.s32.f32 %v1835
    %v1900 = vcvt.s32.f32 %v1836
    %v1901 = vcvt.s32.f32 %v1837
    %v1902 = vcvt.s32.f32 %v1838
    %v1903 = vcvt.s32.f32 %v1839
    %v1904 = vcvt.s32.f32 %v1840
    %v1905 = vcvt.s32.f32 %v1841
    %v1906 = vcvt.s32.f32 %v1842
    %v1907 = vcvt.s32.f32 %v1843
    %v1908 = vcvt.s32.f32 %v1844
    %v1909 = vcvt.s32.f32 %v1845
    %v1910 = vcvt.s32.f32 %v1846
    %v1911 = vcvt.s32.f32 %v1847
    %v1912 = vcvt.s32.f32 %v1848
    %v1913 = vcvt.s32.f32 %v1849
    %v1914 = vcvt.s32.f32 %v1850
    %v1915 = vcvt.s32.f32 %v1851
    %v1916 = vcvt.s32.f32 %v1852
    %v1917 = vcvt.s32.f32 %v1853
    %v1918 = vcvt.s32.f32 %v1854
    %v1919 = vcvt.s32.f32 %v1855
    %v1920 = vcvt.s32.f32 %v1856
    %v1921 = vcvt.s32.f32 %v1857
    %v1922 = vcvt.s32.f32 %v1858
    %1923 = vmatpush.msra.mxu0 %v102
    %1924 = vmatpush.msra.mxu0 %v101
    %1925 = vmatpush.msra.mxu0 %v100
    %1926 = vmatpush.msra.mxu0 %v99
    %1927 = vmatpush.msra.mxu0 %v98
    %1928 = vmatpush.msra.mxu0 %v97
    %1929 = vmatpush.msra.mxu0 %v96
    %1930 = vmatpush.msra.mxu0 %v95
    %1931 = vmatpush.msra.mxu0 %v94
    %1932 = vmatpush.msra.mxu0 %v93
    %1933 = vmatpush.msra.mxu0 %v92
    %1934 = vmatpush.msra.mxu0 %v91
    %1935 = vmatpush.msra.mxu0 %v90
    %1936 = vmatpush.msra.mxu0 %v89
    %1937 = vmatpush.msra.mxu0 %v88
    %1938 = vmatpush.msra.mxu0 %v87
    %1939 = vmatmul.f32.gmra.mxu0 %v1859
    %v1940 = vpop.f32.mrf.mxu0
    %v1941 = vadd.f32 0.0, %v1940
    %1942 = vmatmul.f32.gmra.mxu0 %v1860
    %v1943 = vpop.f32.mrf.mxu0
    %v1944 = vadd.f32 0.0, %v1943
    %1945 = vmatmul.f32.gmra.mxu0 %v1861
    %v1946 = vpop.f32.mrf.mxu0
    %v1947 = vadd.f32 0.0, %v1946
    %1948 = vmatmul.f32.gmra.mxu0 %v1862
    %v1949 = vpop.f32.mrf.mxu0
    %v1950 = vadd.f32 0.0, %v1949
    %1951 = vmatmul.f32.gmra.mxu0 %v1863
    %v1952 = vpop.f32.mrf.mxu0
    %v1953 = vadd.f32 0.0, %v1952
    %1954 = vmatmul.f32.gmra.mxu0 %v1864
    %v1955 = vpop.f32.mrf.mxu0
    %v1956 = vadd.f32 0.0, %v1955
    %1957 = vmatmul.f32.gmra.mxu0 %v1865
    %v1958 = vpop.f32.mrf.mxu0
    %v1959 = vadd.f32 0.0, %v1958
    %1960 = vmatmul.f32.gmra.mxu0 %v1866
    %v1961 = vpop.f32.mrf.mxu0
    %v1962 = vadd.f32 0.0, %v1961
    %1963 = vmatmul.f32.gmra.mxu0 %v1867
    %v1964 = vpop.f32.mrf.mxu0
    %v1965 = vadd.f32 0.0, %v1964
    %1966 = vmatmul.f32.gmra.mxu0 %v1868
    %v1967 = vpop.f32.mrf.mxu0
    %v1968 = vadd.f32 0.0, %v1967
    %1969 = vmatmul.f32.gmra.mxu0 %v1869
    %v1970 = vpop.f32.mrf.mxu0
    %v1971 = vadd.f32 0.0, %v1970
    %1972 = vmatmul.f32.gmra.mxu0 %v1870
    %v1973 = vpop.f32.mrf.mxu0
    %v1974 = vadd.f32 0.0, %v1973
    %1975 = vmatmul.f32.gmra.mxu0 %v1871
    %v1976 = vpop.f32.mrf.mxu0
    %v1977 = vadd.f32 0.0, %v1976
    %1978 = vmatmul.f32.gmra.mxu0 %v1872
    %v1979 = vpop.f32.mrf.mxu0
    %v1980 = vadd.f32 0.0, %v1979
    %1981 = vmatmul.f32.gmra.mxu0 %v1873
    %v1982 = vpop.f32.mrf.mxu0
    %v1983 = vadd.f32 0.0, %v1982
    %1984 = vmatmul.f32.gmra.mxu0 %v1874
    %v1985 = vpop.f32.mrf.mxu0
    %v1986 = vadd.f32 0.0, %v1985
    %1987 = vmatmul.f32.gmra.mxu0 %v1875
    %v1988 = vpop.f32.mrf.mxu0
    %v1989 = vadd.f32 0.0, %v1988
    %1990 = vmatmul.f32.gmra.mxu0 %v1876
    %v1991 = vpop.f32.mrf.mxu0
    %v1992 = vadd.f32 0.0, %v1991
    %1993 = vmatmul.f32.gmra.mxu0 %v1877
    %v1994 = vpop.f32.mrf.mxu0
    %v1995 = vadd.f32 0.0, %v1994
    %1996 = vmatmul.f32.gmra.mxu0 %v1878
    %v1997 = vpop.f32.mrf.mxu0
    %v1998 = vadd.f32 0.0, %v1997
    %1999 = vmatmul.f32.gmra.mxu0 %v1879
    %v2000 = vpop.f32.mrf.mxu0
    %v2001 = vadd.f32 0.0, %v2000
    %2002 = vmatmul.f32.gmra.mxu0 %v1880
    %v2003 = vpop.f32.mrf.mxu0
    %v2004 = vadd.f32 0.0, %v2003
    %2005 = vmatmul.f32.gmra.mxu0 %v1881
    %v2006 = vpop.f32.mrf.mxu0
    %v2007 = vadd.f32 0.0, %v2006
    %2008 = vmatmul.f32.gmra.mxu0 %v1882
    %v2009 = vpop.f32.mrf.mxu0
    %v2010 = vadd.f32 0.0, %v2009
    %2011 = vmatmul.f32.gmra.mxu0 %v1883
    %v2012 = vpop.f32.mrf.mxu0
    %v2013 = vadd.f32 0.0, %v2012
    %2014 = vmatmul.f32.gmra.mxu0 %v1884
    %v2015 = vpop.f32.mrf.mxu0
    %v2016 = vadd.f32 0.0, %v2015
    %2017 = vmatmul.f32.gmra.mxu0 %v1885
    %v2018 = vpop.f32.mrf.mxu0
    %v2019 = vadd.f32 0.0, %v2018
    %2020 = vmatmul.f32.gmra.mxu0 %v1886
    %v2021 = vpop.f32.mrf.mxu0
    %v2022 = vadd.f32 0.0, %v2021
    %2023 = vmatmul.f32.gmra.mxu0 %v1887
    %v2024 = vpop.f32.mrf.mxu0
    %v2025 = vadd.f32 0.0, %v2024
    %2026 = vmatmul.f32.gmra.mxu0 %v1888
    %v2027 = vpop.f32.mrf.mxu0
    %v2028 = vadd.f32 0.0, %v2027
    %2029 = vmatmul.f32.gmra.mxu0 %v1889
    %v2030 = vpop.f32.mrf.mxu0
    %v2031 = vadd.f32 0.0, %v2030
    %2032 = vmatmul.f32.gmra.mxu0 %v1890
    %v2033 = vpop.f32.mrf.mxu0
    %v2034 = vadd.f32 0.0, %v2033
    %2035 = vmatmul.f32.gmra.mxu0 %v1891
    %v2036 = vpop.f32.mrf.mxu0
    %v2037 = vadd.f32 0.0, %v2036
    %2038 = vmatmul.f32.gmra.mxu0 %v1892
    %v2039 = vpop.f32.mrf.mxu0
    %v2040 = vadd.f32 0.0, %v2039
    %2041 = vmatmul.f32.gmra.mxu0 %v1893
    %v2042 = vpop.f32.mrf.mxu0
    %v2043 = vadd.f32 0.0, %v2042
    %2044 = vmatmul.f32.gmra.mxu0 %v1894
    %v2045 = vpop.f32.mrf.mxu0
    %v2046 = vadd.f32 0.0, %v2045
    %2047 = vmatmul.f32.gmra.mxu0 %v1895
    %v2048 = vpop.f32.mrf.mxu0
    %v2049 = vadd.f32 0.0, %v2048
    %2050 = vmatmul.f32.gmra.mxu0 %v1896
    %v2051 = vpop.f32.mrf.mxu0
    %v2052 = vadd.f32 0.0, %v2051
    %2053 = vmatmul.f32.gmra.mxu0 %v1897
    %v2054 = vpop.f32.mrf.mxu0
    %v2055 = vadd.f32 0.0, %v2054
    %2056 = vmatmul.f32.gmra.mxu0 %v1898
    %v2057 = vpop.f32.mrf.mxu0
    %v2058 = vadd.f32 0.0, %v2057
    %2059 = vmatmul.f32.gmra.mxu0 %v1899
    %v2060 = vpop.f32.mrf.mxu0
    %v2061 = vadd.f32 0.0, %v2060
    %2062 = vmatmul.f32.gmra.mxu0 %v1900
    %v2063 = vpop.f32.mrf.mxu0
    %v2064 = vadd.f32 0.0, %v2063
    %2065 = vmatmul.f32.gmra.mxu0 %v1901
    %v2066 = vpop.f32.mrf.mxu0
    %v2067 = vadd.f32 0.0, %v2066
    %2068 = vmatmul.f32.gmra.mxu0 %v1902
    %v2069 = vpop.f32.mrf.mxu0
    %v2070 = vadd.f32 0.0, %v2069
    %2071 = vmatmul.f32.gmra.mxu0 %v1903
    %v2072 = vpop.f32.mrf.mxu0
    %v2073 = vadd.f32 0.0, %v2072
    %2074 = vmatmul.f32.gmra.mxu0 %v1904
    %v2075 = vpop.f32.mrf.mxu0
    %v2076 = vadd.f32 0.0, %v2075
    %2077 = vmatmul.f32.gmra.mxu0 %v1905
    %v2078 = vpop.f32.mrf.mxu0
    %v2079 = vadd.f32 0.0, %v2078
    %2080 = vmatmul.f32.gmra.mxu0 %v1906
    %v2081 = vpop.f32.mrf.mxu0
    %v2082 = vadd.f32 0.0, %v2081
    %2083 = vmatmul.f32.gmra.mxu0 %v1907
    %v2084 = vpop.f32.mrf.mxu0
    %v2085 = vadd.f32 0.0, %v2084
    %2086 = vmatmul.f32.gmra.mxu0 %v1908
    %v2087 = vpop.f32.mrf.mxu0
    %v2088 = vadd.f32 0.0, %v2087
    %2089 = vmatmul.f32.gmra.mxu0 %v1909
    %v2090 = vpop.f32.mrf.mxu0
    %v2091 = vadd.f32 0.0, %v2090
    %2092 = vmatmul.f32.gmra.mxu0 %v1910
    %v2093 = vpop.f32.mrf.mxu0
    %v2094 = vadd.f32 0.0, %v2093
    %2095 = vmatmul.f32.gmra.mxu0 %v1911
    %v2096 = vpop.f32.mrf.mxu0
    %v2097 = vadd.f32 0.0, %v2096
    %2098 = vmatmul.f32.gmra.mxu0 %v1912
    %v2099 = vpop.f32.mrf.mxu0
    %v2100 = vadd.f32 0.0, %v2099
    %2101 = vmatmul.f32.gmra.mxu0 %v1913
    %v2102 = vpop.f32.mrf.mxu0
    %v2103 = vadd.f32 0.0, %v2102
    %2104 = vmatmul.f32.gmra.mxu0 %v1914
    %v2105 = vpop.f32.mrf.mxu0
    %v2106 = vadd.f32 0.0, %v2105
    %2107 = vmatmul.f32.gmra.mxu0 %v1915
    %v2108 = vpop.f32.mrf.mxu0
    %v2109 = vadd.f32 0.0, %v2108
    %2110 = vmatmul.f32.gmra.mxu0 %v1916
    %v2111 = vpop.f32.mrf.mxu0
    %v2112 = vadd.f32 0.0, %v2111
    %2113 = vmatmul.f32.gmra.mxu0 %v1917
    %v2114 = vpop.f32.mrf.mxu0
    %v2115 = vadd.f32 0.0, %v2114
    %2116 = vmatmul.f32.gmra.mxu0 %v1918
    %v2117 = vpop.f32.mrf.mxu0
    %v2118 = vadd.f32 0.0, %v2117
    %2119 = vmatmul.f32.gmra.mxu0 %v1919
    %v2120 = vpop.f32.mrf.mxu0
    %v2121 = vadd.f32 0.0, %v2120
    %2122 = vmatmul.f32.gmra.mxu0 %v1920
    %v2123 = vpop.f32.mrf.mxu0
    %v2124 = vadd.f32 0.0, %v2123
    %2125 = vmatmul.f32.gmra.mxu0 %v1921
    %v2126 = vpop.f32.mrf.mxu0
    %v2127 = vadd.f32 0.0, %v2126
    %2128 = vmatmul.f32.gmra.mxu0 %v1922
    %v2129 = vpop.f32.mrf.mxu0
    %v2130 = vadd.f32 0.0, %v2129
    %2131 = vdwg.mxu0
    %2132 = vst.msk [vmem:[%s4] sm:$0xff] %vm104, %v1941
    %2133 = vst.msk [vmem:[%s4 + $0x8] sm:$0xff] %vm104, %v1944
    %2134 = vst.msk [vmem:[%s4 + $0x10] sm:$0xff] %vm104, %v1947
    %2135 = vst.msk [vmem:[%s4 + $0x18] sm:$0xff] %vm104, %v1950
    %2136 = vst.msk [vmem:[%s4 + $0x20] sm:$0xff] %vm104, %v1953
    %2137 = vst.msk [vmem:[%s4 + $0x28] sm:$0xff] %vm104, %v1956
    %2138 = vst.msk [vmem:[%s4 + $0x30] sm:$0xff] %vm104, %v1959
    %2139 = vst.msk [vmem:[%s4 + $0x38] sm:$0xff] %vm104, %v1962
    %2140 = vst.msk [vmem:[%s4 + $0x40] sm:$0xff] %vm104, %v1965
    %2141 = vst.msk [vmem:[%s4 + $0x48] sm:$0xff] %vm104, %v1968
    %2142 = vst.msk [vmem:[%s4 + $0x50] sm:$0xff] %vm104, %v1971
    %2143 = vst.msk [vmem:[%s4 + $0x58] sm:$0xff] %vm104, %v1974
    %2144 = vst.msk [vmem:[%s4 + $0x60] sm:$0xff] %vm104, %v1977
    %2145 = vst.msk [vmem:[%s4 + $0x68] sm:$0xff] %vm104, %v1980
    %2146 = vst.msk [vmem:[%s4 + $0x70] sm:$0xff] %vm104, %v1983
    %2147 = vst.msk [vmem:[%s4 + $0x78] sm:$0xff] %vm104, %v1986
    %2148 = vst.msk [vmem:[%s4 + $0x80] sm:$0xff] %vm104, %v1989
    %2149 = vst.msk [vmem:[%s4 + $0x88] sm:$0xff] %vm104, %v1992
    %2150 = vst.msk [vmem:[%s4 + $0x90] sm:$0xff] %vm104, %v1995
    %2151 = vst.msk [vmem:[%s4 + $0x98] sm:$0xff] %vm104, %v1998
    %2152 = vst.msk [vmem:[%s4 + $0xa0] sm:$0xff] %vm104, %v2001
    %2153 = vst.msk [vmem:[%s4 + $0xa8] sm:$0xff] %vm104, %v2004
    %2154 = vst.msk [vmem:[%s4 + $0xb0] sm:$0xff] %vm104, %v2007
    %2155 = vst.msk [vmem:[%s4 + $0xb8] sm:$0xff] %vm104, %v2010
    %2156 = vst.msk [vmem:[%s4 + $0xc0] sm:$0xff] %vm104, %v2013
    %2157 = vst.msk [vmem:[%s4 + $0xc8] sm:$0xff] %vm104, %v2016
    %2158 = vst.msk [vmem:[%s4 + $0xd0] sm:$0xff] %vm104, %v2019
    %2159 = vst.msk [vmem:[%s4 + $0xd8] sm:$0xff] %vm104, %v2022
    %2160 = vst.msk [vmem:[%s4 + $0xe0] sm:$0xff] %vm104, %v2025
    %2161 = vst.msk [vmem:[%s4 + $0xe8] sm:$0xff] %vm104, %v2028
    %2162 = vst.msk [vmem:[%s4 + $0xf0] sm:$0xff] %vm104, %v2031
    %2163 = vst.msk [vmem:[%s4 + $0xf8] sm:$0xff] %vm104, %v2034
    %2164 = vst.msk [vmem:[%s4 + $0x100] sm:$0xff] %vm104, %v2037
    %2165 = vst.msk [vmem:[%s4 + $0x108] sm:$0xff] %vm104, %v2040
    %2166 = vst.msk [vmem:[%s4 + $0x110] sm:$0xff] %vm104, %v2043
    %2167 = vst.msk [vmem:[%s4 + $0x118] sm:$0xff] %vm104, %v2046
    %2168 = vst.msk [vmem:[%s4 + $0x120] sm:$0xff] %vm104, %v2049
    %2169 = vst.msk [vmem:[%s4 + $0x128] sm:$0xff] %vm104, %v2052
    %2170 = vst.msk [vmem:[%s4 + $0x130] sm:$0xff] %vm104, %v2055
    %2171 = vst.msk [vmem:[%s4 + $0x138] sm:$0xff] %vm104, %v2058
    %2172 = vst.msk [vmem:[%s4 + $0x140] sm:$0xff] %vm104, %v2061
    %2173 = vst.msk [vmem:[%s4 + $0x148] sm:$0xff] %vm104, %v2064
    %2174 = vst.msk [vmem:[%s4 + $0x150] sm:$0xff] %vm104, %v2067
    %2175 = vst.msk [vmem:[%s4 + $0x158] sm:$0xff] %vm104, %v2070
    %2176 = vst.msk [vmem:[%s4 + $0x160] sm:$0xff] %vm104, %v2073
    %2177 = vst.msk [vmem:[%s4 + $0x168] sm:$0xff] %vm104, %v2076
    %2178 = vst.msk [vmem:[%s4 + $0x170] sm:$0xff] %vm104, %v2079
    %2179 = vst.msk [vmem:[%s4 + $0x178] sm:$0xff] %vm104, %v2082
    %2180 = vst.msk [vmem:[%s4 + $0x180] sm:$0xff] %vm104, %v2085
    %2181 = vst.msk [vmem:[%s4 + $0x188] sm:$0xff] %vm104, %v2088
    %2182 = vst.msk [vmem:[%s4 + $0x190] sm:$0xff] %vm104, %v2091
    %2183 = vst.msk [vmem:[%s4 + $0x198] sm:$0xff] %vm104, %v2094
    %2184 = vst.msk [vmem:[%s4 + $0x1a0] sm:$0xff] %vm104, %v2097
    %2185 = vst.msk [vmem:[%s4 + $0x1a8] sm:$0xff] %vm104, %v2100
    %2186 = vst.msk [vmem:[%s4 + $0x1b0] sm:$0xff] %vm104, %v2103
    %2187 = vst.msk [vmem:[%s4 + $0x1b8] sm:$0xff] %vm104, %v2106
    %2188 = vst.msk [vmem:[%s4 + $0x1c0] sm:$0xff] %vm104, %v2109
    %2189 = vst.msk [vmem:[%s4 + $0x1c8] sm:$0xff] %vm104, %v2112
    %2190 = vst.msk [vmem:[%s4 + $0x1d0] sm:$0xff] %vm104, %v2115
    %2191 = vst.msk [vmem:[%s4 + $0x1d8] sm:$0xff] %vm104, %v2118
    %2192 = vst.msk [vmem:[%s4 + $0x1e0] sm:$0xff] %vm104, %v2121
    %2193 = vst.msk [vmem:[%s4 + $0x1e8] sm:$0xff] %vm104, %v2124
    %2194 = vst.msk [vmem:[%s4 + $0x1f0] sm:$0xff] %vm104, %v2127
    %2195 = vst.msk [vmem:[%s4 + $0x1f8] sm:$0xff] %vm104, %v2130
    %2196 = vst [vmem:[%s5] sm:$0xff] %v1859
    %2197 = vst [vmem:[%s5 + $0x8] sm:$0xff] %v1860
    %2198 = vst [vmem:[%s5 + $0x10] sm:$0xff] %v1861
    %2199 = vst [vmem:[%s5 + $0x18] sm:$0xff] %v1862
    %2200 = vst [vmem:[%s5 + $0x20] sm:$0xff] %v1863
    %2201 = vst [vmem:[%s5 + $0x28] sm:$0xff] %v1864
    %2202 = vst [vmem:[%s5 + $0x30] sm:$0xff] %v1865
    %2203 = vst [vmem:[%s5 + $0x38] sm:$0xff] %v1866
    %2204 = vst [vmem:[%s5 + $0x40] sm:$0xff] %v1867
    %2205 = vst [vmem:[%s5 + $0x48] sm:$0xff] %v1868
    %2206 = vst [vmem:[%s5 + $0x50] sm:$0xff] %v1869
    %2207 = vst [vmem:[%s5 + $0x58] sm:$0xff] %v1870
    %2208 = vst [vmem:[%s5 + $0x60] sm:$0xff] %v1871
    %2209 = vst [vmem:[%s5 + $0x68] sm:$0xff] %v1872
    %2210 = vst [vmem:[%s5 + $0x70] sm:$0xff] %v1873
    %2211 = vst [vmem:[%s5 + $0x78] sm:$0xff] %v1874
    %2212 = vst [vmem:[%s5 + $0x80] sm:$0xff] %v1875
    %2213 = vst [vmem:[%s5 + $0x88] sm:$0xff] %v1876
    %2214 = vst [vmem:[%s5 + $0x90] sm:$0xff] %v1877
    %2215 = vst [vmem:[%s5 + $0x98] sm:$0xff] %v1878
    %2216 = vst [vmem:[%s5 + $0xa0] sm:$0xff] %v1879
    %2217 = vst [vmem:[%s5 + $0xa8] sm:$0xff] %v1880
    %2218 = vst [vmem:[%s5 + $0xb0] sm:$0xff] %v1881
    %2219 = vst [vmem:[%s5 + $0xb8] sm:$0xff] %v1882
    %2220 = vst [vmem:[%s5 + $0xc0] sm:$0xff] %v1883
    %2221 = vst [vmem:[%s5 + $0xc8] sm:$0xff] %v1884
    %2222 = vst [vmem:[%s5 + $0xd0] sm:$0xff] %v1885
    %2223 = vst [vmem:[%s5 + $0xd8] sm:$0xff] %v1886
    %2224 = vst [vmem:[%s5 + $0xe0] sm:$0xff] %v1887
    %2225 = vst [vmem:[%s5 + $0xe8] sm:$0xff] %v1888
    %2226 = vst [vmem:[%s5 + $0xf0] sm:$0xff] %v1889
    %2227 = vst [vmem:[%s5 + $0xf8] sm:$0xff] %v1890
    %2228 = vst [vmem:[%s5 + $0x100] sm:$0xff] %v1891
    %2229 = vst [vmem:[%s5 + $0x108] sm:$0xff] %v1892
    %2230 = vst [vmem:[%s5 + $0x110] sm:$0xff] %v1893
    %2231 = vst [vmem:[%s5 + $0x118] sm:$0xff] %v1894
    %2232 = vst [vmem:[%s5 + $0x120] sm:$0xff] %v1895
    %2233 = vst [vmem:[%s5 + $0x128] sm:$0xff] %v1896
    %2234 = vst [vmem:[%s5 + $0x130] sm:$0xff] %v1897
    %2235 = vst [vmem:[%s5 + $0x138] sm:$0xff] %v1898
    %2236 = vst [vmem:[%s5 + $0x140] sm:$0xff] %v1899
    %2237 = vst [vmem:[%s5 + $0x148] sm:$0xff] %v1900
    %2238 = vst [vmem:[%s5 + $0x150] sm:$0xff] %v1901
    %2239 = vst [vmem:[%s5 + $0x158] sm:$0xff] %v1902
    %2240 = vst [vmem:[%s5 + $0x160] sm:$0xff] %v1903
    %2241 = vst [vmem:[%s5 + $0x168] sm:$0xff] %v1904
    %2242 = vst [vmem:[%s5 + $0x170] sm:$0xff] %v1905
    %2243 = vst [vmem:[%s5 + $0x178] sm:$0xff] %v1906
    %2244 = vst [vmem:[%s5 + $0x180] sm:$0xff] %v1907
    %2245 = vst [vmem:[%s5 + $0x188] sm:$0xff] %v1908
    %2246 = vst [vmem:[%s5 + $0x190] sm:$0xff] %v1909
    %2247 = vst [vmem:[%s5 + $0x198] sm:$0xff] %v1910
    %2248 = vst [vmem:[%s5 + $0x1a0] sm:$0xff] %v1911
    %2249 = vst [vmem:[%s5 + $0x1a8] sm:$0xff] %v1912
    %2250 = vst [vmem:[%s5 + $0x1b0] sm:$0xff] %v1913
    %2251 = vst [vmem:[%s5 + $0x1b8] sm:$0xff] %v1914
    %2252 = vst [vmem:[%s5 + $0x1c0] sm:$0xff] %v1915
    %2253 = vst [vmem:[%s5 + $0x1c8] sm:$0xff] %v1916
    %2254 = vst [vmem:[%s5 + $0x1d0] sm:$0xff] %v1917
    %2255 = vst [vmem:[%s5 + $0x1d8] sm:$0xff] %v1918
    %2256 = vst [vmem:[%s5 + $0x1e0] sm:$0xff] %v1919
    %2257 = vst [vmem:[%s5 + $0x1e8] sm:$0xff] %v1920
    %2258 = vst [vmem:[%s5 + $0x1f0] sm:$0xff] %v1921
    %2259 = vst [vmem:[%s5 + $0x1f8] sm:$0xff] %v1922
    %v2260 = vsub.f32 %v1941, %v22
    %v2261 = vsub.f32 %v1944, %v23
    %v2262 = vsub.f32 %v1947, %v24
    %v2263 = vsub.f32 %v1950, %v25
    %v2264 = vsub.f32 %v1953, %v26
    %v2265 = vsub.f32 %v1956, %v27
    %v2266 = vsub.f32 %v1959, %v28
    %v2267 = vsub.f32 %v1962, %v29
    %v2268 = vsub.f32 %v1965, %v30
    %v2269 = vsub.f32 %v1968, %v31
    %v2270 = vsub.f32 %v1971, %v32
    %v2271 = vsub.f32 %v1974, %v33
    %v2272 = vsub.f32 %v1977, %v34
    %v2273 = vsub.f32 %v1980, %v35
    %v2274 = vsub.f32 %v1983, %v36
    %v2275 = vsub.f32 %v1986, %v37
    %v2276 = vsub.f32 %v1989, %v38
    %v2277 = vsub.f32 %v1992, %v39
    %v2278 = vsub.f32 %v1995, %v40
    %v2279 = vsub.f32 %v1998, %v41
    %v2280 = vsub.f32 %v2001, %v42
    %v2281 = vsub.f32 %v2004, %v43
    %v2282 = vsub.f32 %v2007, %v44
    %v2283 = vsub.f32 %v2010, %v45
    %v2284 = vsub.f32 %v2013, %v46
    %v2285 = vsub.f32 %v2016, %v47
    %v2286 = vsub.f32 %v2019, %v48
    %v2287 = vsub.f32 %v2022, %v49
    %v2288 = vsub.f32 %v2025, %v50
    %v2289 = vsub.f32 %v2028, %v51
    %v2290 = vsub.f32 %v2031, %v52
    %v2291 = vsub.f32 %v2034, %v53
    %v2292 = vsub.f32 %v2037, %v54
    %v2293 = vsub.f32 %v2040, %v55
    %v2294 = vsub.f32 %v2043, %v56
    %v2295 = vsub.f32 %v2046, %v57
    %v2296 = vsub.f32 %v2049, %v58
    %v2297 = vsub.f32 %v2052, %v59
    %v2298 = vsub.f32 %v2055, %v60
    %v2299 = vsub.f32 %v2058, %v61
    %v2300 = vsub.f32 %v2061, %v62
    %v2301 = vsub.f32 %v2064, %v63
    %v2302 = vsub.f32 %v2067, %v64
    %v2303 = vsub.f32 %v2070, %v65
    %v2304 = vsub.f32 %v2073, %v66
    %v2305 = vsub.f32 %v2076, %v67
    %v2306 = vsub.f32 %v2079, %v68
    %v2307 = vsub.f32 %v2082, %v69
    %v2308 = vsub.f32 %v2085, %v70
    %v2309 = vsub.f32 %v2088, %v71
    %v2310 = vsub.f32 %v2091, %v72
    %v2311 = vsub.f32 %v2094, %v73
    %v2312 = vsub.f32 %v2097, %v74
    %v2313 = vsub.f32 %v2100, %v75
    %v2314 = vsub.f32 %v2103, %v76
    %v2315 = vsub.f32 %v2106, %v77
    %v2316 = vsub.f32 %v2109, %v78
    %v2317 = vsub.f32 %v2112, %v79
    %v2318 = vsub.f32 %v2115, %v80
    %v2319 = vsub.f32 %v2118, %v81
    %v2320 = vsub.f32 %v2121, %v82
    %v2321 = vsub.f32 %v2124, %v83
    %v2322 = vsub.f32 %v2127, %v84
    %v2323 = vsub.f32 %v2130, %v85
    %v2324 = vmul.f32 %v2260, %v2260
    %v2325 = vmul.f32 %v2261, %v2261
    %v2326 = vmul.f32 %v2262, %v2262
    %v2327 = vmul.f32 %v2263, %v2263
    %v2328 = vmul.f32 %v2264, %v2264
    %v2329 = vmul.f32 %v2265, %v2265
    %v2330 = vmul.f32 %v2266, %v2266
    %v2331 = vmul.f32 %v2267, %v2267
    %v2332 = vmul.f32 %v2268, %v2268
    %v2333 = vmul.f32 %v2269, %v2269
    %v2334 = vmul.f32 %v2270, %v2270
    %v2335 = vmul.f32 %v2271, %v2271
    %v2336 = vmul.f32 %v2272, %v2272
    %v2337 = vmul.f32 %v2273, %v2273
    %v2338 = vmul.f32 %v2274, %v2274
    %v2339 = vmul.f32 %v2275, %v2275
    %v2340 = vmul.f32 %v2276, %v2276
    %v2341 = vmul.f32 %v2277, %v2277
    %v2342 = vmul.f32 %v2278, %v2278
    %v2343 = vmul.f32 %v2279, %v2279
    %v2344 = vmul.f32 %v2280, %v2280
    %v2345 = vmul.f32 %v2281, %v2281
    %v2346 = vmul.f32 %v2282, %v2282
    %v2347 = vmul.f32 %v2283, %v2283
    %v2348 = vmul.f32 %v2284, %v2284
    %v2349 = vmul.f32 %v2285, %v2285
    %v2350 = vmul.f32 %v2286, %v2286
    %v2351 = vmul.f32 %v2287, %v2287
    %v2352 = vmul.f32 %v2288, %v2288
    %v2353 = vmul.f32 %v2289, %v2289
    %v2354 = vmul.f32 %v2290, %v2290
    %v2355 = vmul.f32 %v2291, %v2291
    %v2356 = vmul.f32 %v2292, %v2292
    %v2357 = vmul.f32 %v2293, %v2293
    %v2358 = vmul.f32 %v2294, %v2294
    %v2359 = vmul.f32 %v2295, %v2295
    %v2360 = vmul.f32 %v2296, %v2296
    %v2361 = vmul.f32 %v2297, %v2297
    %v2362 = vmul.f32 %v2298, %v2298
    %v2363 = vmul.f32 %v2299, %v2299
    %v2364 = vmul.f32 %v2300, %v2300
    %v2365 = vmul.f32 %v2301, %v2301
    %v2366 = vmul.f32 %v2302, %v2302
    %v2367 = vmul.f32 %v2303, %v2303
    %v2368 = vmul.f32 %v2304, %v2304
    %v2369 = vmul.f32 %v2305, %v2305
    %v2370 = vmul.f32 %v2306, %v2306
    %v2371 = vmul.f32 %v2307, %v2307
    %v2372 = vmul.f32 %v2308, %v2308
    %v2373 = vmul.f32 %v2309, %v2309
    %v2374 = vmul.f32 %v2310, %v2310
    %v2375 = vmul.f32 %v2311, %v2311
    %v2376 = vmul.f32 %v2312, %v2312
    %v2377 = vmul.f32 %v2313, %v2313
    %v2378 = vmul.f32 %v2314, %v2314
    %v2379 = vmul.f32 %v2315, %v2315
    %v2380 = vmul.f32 %v2316, %v2316
    %v2381 = vmul.f32 %v2317, %v2317
    %v2382 = vmul.f32 %v2318, %v2318
    %v2383 = vmul.f32 %v2319, %v2319
    %v2384 = vmul.f32 %v2320, %v2320
    %v2385 = vmul.f32 %v2321, %v2321
    %v2386 = vmul.f32 %v2322, %v2322
    %v2387 = vmul.f32 %v2323, %v2323
    %v2388 = vsel %vm104, %v2324, 0.0
    %v2389 = vsel %vm104, %v2325, 0.0
    %v2390 = vadd.f32 %v2388, %v2389
    %v2391 = vsel %vm104, %v2326, 0.0
    %v2392 = vadd.f32 %v2390, %v2391
    %v2393 = vsel %vm104, %v2327, 0.0
    %v2394 = vadd.f32 %v2392, %v2393
    %v2395 = vsel %vm104, %v2328, 0.0
    %v2396 = vadd.f32 %v2394, %v2395
    %v2397 = vsel %vm104, %v2329, 0.0
    %v2398 = vadd.f32 %v2396, %v2397
    %v2399 = vsel %vm104, %v2330, 0.0
    %v2400 = vadd.f32 %v2398, %v2399
    %v2401 = vsel %vm104, %v2331, 0.0
    %v2402 = vadd.f32 %v2400, %v2401
    %v2403 = vsel %vm104, %v2332, 0.0
    %v2404 = vadd.f32 %v2402, %v2403
    %v2405 = vsel %vm104, %v2333, 0.0
    %v2406 = vadd.f32 %v2404, %v2405
    %v2407 = vsel %vm104, %v2334, 0.0
    %v2408 = vadd.f32 %v2406, %v2407
    %v2409 = vsel %vm104, %v2335, 0.0
    %v2410 = vadd.f32 %v2408, %v2409
    %v2411 = vsel %vm104, %v2336, 0.0
    %v2412 = vadd.f32 %v2410, %v2411
    %v2413 = vsel %vm104, %v2337, 0.0
    %v2414 = vadd.f32 %v2412, %v2413
    %v2415 = vsel %vm104, %v2338, 0.0
    %v2416 = vadd.f32 %v2414, %v2415
    %v2417 = vsel %vm104, %v2339, 0.0
    %v2418 = vadd.f32 %v2416, %v2417
    %v2419 = vsel %vm104, %v2340, 0.0
    %v2420 = vadd.f32 %v2418, %v2419
    %v2421 = vsel %vm104, %v2341, 0.0
    %v2422 = vadd.f32 %v2420, %v2421
    %v2423 = vsel %vm104, %v2342, 0.0
    %v2424 = vadd.f32 %v2422, %v2423
    %v2425 = vsel %vm104, %v2343, 0.0
    %v2426 = vadd.f32 %v2424, %v2425
    %v2427 = vsel %vm104, %v2344, 0.0
    %v2428 = vadd.f32 %v2426, %v2427
    %v2429 = vsel %vm104, %v2345, 0.0
    %v2430 = vadd.f32 %v2428, %v2429
    %v2431 = vsel %vm104, %v2346, 0.0
    %v2432 = vadd.f32 %v2430, %v2431
    %v2433 = vsel %vm104, %v2347, 0.0
    %v2434 = vadd.f32 %v2432, %v2433
    %v2435 = vsel %vm104, %v2348, 0.0
    %v2436 = vadd.f32 %v2434, %v2435
    %v2437 = vsel %vm104, %v2349, 0.0
    %v2438 = vadd.f32 %v2436, %v2437
    %v2439 = vsel %vm104, %v2350, 0.0
    %v2440 = vadd.f32 %v2438, %v2439
    %v2441 = vsel %vm104, %v2351, 0.0
    %v2442 = vadd.f32 %v2440, %v2441
    %v2443 = vsel %vm104, %v2352, 0.0
    %v2444 = vadd.f32 %v2442, %v2443
    %v2445 = vsel %vm104, %v2353, 0.0
    %v2446 = vadd.f32 %v2444, %v2445
    %v2447 = vsel %vm104, %v2354, 0.0
    %v2448 = vadd.f32 %v2446, %v2447
    %v2449 = vsel %vm104, %v2355, 0.0
    %v2450 = vadd.f32 %v2448, %v2449
    %v2451 = vsel %vm104, %v2356, 0.0
    %v2452 = vadd.f32 %v2450, %v2451
    %v2453 = vsel %vm104, %v2357, 0.0
    %v2454 = vadd.f32 %v2452, %v2453
    %v2455 = vsel %vm104, %v2358, 0.0
    %v2456 = vadd.f32 %v2454, %v2455
    %v2457 = vsel %vm104, %v2359, 0.0
    %v2458 = vadd.f32 %v2456, %v2457
    %v2459 = vsel %vm104, %v2360, 0.0
    %v2460 = vadd.f32 %v2458, %v2459
    %v2461 = vsel %vm104, %v2361, 0.0
    %v2462 = vadd.f32 %v2460, %v2461
    %v2463 = vsel %vm104, %v2362, 0.0
    %v2464 = vadd.f32 %v2462, %v2463
    %v2465 = vsel %vm104, %v2363, 0.0
    %v2466 = vadd.f32 %v2464, %v2465
    %v2467 = vsel %vm104, %v2364, 0.0
    %v2468 = vadd.f32 %v2466, %v2467
    %v2469 = vsel %vm104, %v2365, 0.0
    %v2470 = vadd.f32 %v2468, %v2469
    %v2471 = vsel %vm104, %v2366, 0.0
    %v2472 = vadd.f32 %v2470, %v2471
    %v2473 = vsel %vm104, %v2367, 0.0
    %v2474 = vadd.f32 %v2472, %v2473
    %v2475 = vsel %vm104, %v2368, 0.0
    %v2476 = vadd.f32 %v2474, %v2475
    %v2477 = vsel %vm104, %v2369, 0.0
    %v2478 = vadd.f32 %v2476, %v2477
    %v2479 = vsel %vm104, %v2370, 0.0
    %v2480 = vadd.f32 %v2478, %v2479
    %v2481 = vsel %vm104, %v2371, 0.0
    %v2482 = vadd.f32 %v2480, %v2481
    %v2483 = vsel %vm104, %v2372, 0.0
    %v2484 = vadd.f32 %v2482, %v2483
    %v2485 = vsel %vm104, %v2373, 0.0
    %v2486 = vadd.f32 %v2484, %v2485
    %v2487 = vsel %vm104, %v2374, 0.0
    %v2488 = vadd.f32 %v2486, %v2487
    %v2489 = vsel %vm104, %v2375, 0.0
    %v2490 = vadd.f32 %v2488, %v2489
    %v2491 = vsel %vm104, %v2376, 0.0
    %v2492 = vadd.f32 %v2490, %v2491
    %v2493 = vsel %vm104, %v2377, 0.0
    %v2494 = vadd.f32 %v2492, %v2493
    %v2495 = vsel %vm104, %v2378, 0.0
    %v2496 = vadd.f32 %v2494, %v2495
    %v2497 = vsel %vm104, %v2379, 0.0
    %v2498 = vadd.f32 %v2496, %v2497
    %v2499 = vsel %vm104, %v2380, 0.0
    %v2500 = vadd.f32 %v2498, %v2499
    %v2501 = vsel %vm104, %v2381, 0.0
    %v2502 = vadd.f32 %v2500, %v2501
    %v2503 = vsel %vm104, %v2382, 0.0
    %v2504 = vadd.f32 %v2502, %v2503
    %v2505 = vsel %vm104, %v2383, 0.0
    %v2506 = vadd.f32 %v2504, %v2505
    %v2507 = vsel %vm104, %v2384, 0.0
    %v2508 = vadd.f32 %v2506, %v2507
    %v2509 = vsel %vm104, %v2385, 0.0
    %v2510 = vadd.f32 %v2508, %v2509
    %v2511 = vsel %vm104, %v2386, 0.0
    %v2512 = vadd.f32 %v2510, %v2511
    %v2513 = vsel %vm104, %v2387, 0.0
    %v2514 = vadd.f32 %v2512, %v2513
    %2515 = vadd.xlane.f32.xlu0 %v2514
    %v2516 = vpop.xlane.xlu0 %2515
    %v2517 = vrot.slane %v2516, 4
    %v2518 = vadd.f32 %v2516, %v2517
    %v2519 = vrot.slane %v2518, 2
    %v2520 = vadd.f32 %v2518, %v2519
    %v2521 = vrot.slane %v2520, 1
    %v2522 = vadd.f32 %v2520, %v2521
    %s2523 = vtos %v2522
    %v2524 = vstv %s2523
    %vm2525 = vcmask 0
    %2526 = vst.msk [vmem:[#allocation2] sm:$0x1] %vm2525, %v2524
    %2527 = vmatpush.msra.mxu0 %v1874
    %2528 = vmatpush.msra.mxu0 %v1873
    %2529 = vmatpush.msra.mxu0 %v1872
    %2530 = vmatpush.msra.mxu0 %v1871
    %2531 = vmatpush.msra.mxu0 %v1870
    %2532 = vmatpush.msra.mxu0 %v1869
    %2533 = vmatpush.msra.mxu0 %v1868
    %2534 = vmatpush.msra.mxu0 %v1867
    %2535 = vmatpush.msra.mxu0 %v1866
    %2536 = vmatpush.msra.mxu0 %v1865
    %2537 = vmatpush.msra.mxu0 %v1864
    %2538 = vmatpush.msra.mxu0 %v1863
    %2539 = vmatpush.msra.mxu0 %v1862
    %2540 = vmatpush.msra.mxu0 %v1861
    %2541 = vmatpush.msra.mxu0 %v1860
    %2542 = vmatpush.msra.mxu0 %v1859
    %2543 = vmatmul.f32.gmra.mxu0 1.0
    %v2544 = vpop.f32.mrf.mxu0
    %v2545 = vadd.f32 0.0, %v2544
    %2546 = vdwg.mxu0
    %2547 = vmatpush.msra.mxu0 %v1890
    %2548 = vmatpush.msra.mxu0 %v1889
    %2549 = vmatpush.msra.mxu0 %v1888
    %2550 = vmatpush.msra.mxu0 %v1887
    %2551 = vmatpush.msra.mxu0 %v1886
    %2552 = vmatpush.msra.mxu0 %v1885
    %2553 = vmatpush.msra.mxu0 %v1884
    %2554 = vmatpush.msra.mxu0 %v1883
    %2555 = vmatpush.msra.mxu0 %v1882
    %2556 = vmatpush.msra.mxu0 %v1881
    %2557 = vmatpush.msra.mxu0 %v1880
    %2558 = vmatpush.msra.mxu0 %v1879
    %2559 = vmatpush.msra.mxu0 %v1878
    %2560 = vmatpush.msra.mxu0 %v1877
    %2561 = vmatpush.msra.mxu0 %v1876
    %2562 = vmatpush.msra.mxu0 %v1875
    %2563 = vmatmul.f32.gmra.mxu0 1.0
    %v2564 = vpop.f32.mrf.mxu0
    %v2565 = vadd.f32 %v2545, %v2564
    %2566 = vdwg.mxu0
    %2567 = vmatpush.msra.mxu0 %v1906
    %2568 = vmatpush.msra.mxu0 %v1905
    %2569 = vmatpush.msra.mxu0 %v1904
    %2570 = vmatpush.msra.mxu0 %v1903
    %2571 = vmatpush.msra.mxu0 %v1902
    %2572 = vmatpush.msra.mxu0 %v1901
    %2573 = vmatpush.msra.mxu0 %v1900
    %2574 = vmatpush.msra.mxu0 %v1899
    %2575 = vmatpush.msra.mxu0 %v1898
    %2576 = vmatpush.msra.mxu0 %v1897
    %2577 = vmatpush.msra.mxu0 %v1896
    %2578 = vmatpush.msra.mxu0 %v1895
    %2579 = vmatpush.msra.mxu0 %v1894
    %2580 = vmatpush.msra.mxu0 %v1893
    %2581 = vmatpush.msra.mxu0 %v1892
    %2582 = vmatpush.msra.mxu0 %v1891
    %2583 = vmatmul.f32.gmra.mxu0 1.0
    %v2584 = vpop.f32.mrf.mxu0
    %v2585 = vadd.f32 %v2565, %v2584
    %2586 = vdwg.mxu0
    %2587 = vmatpush.msra.mxu0 %v1922
    %2588 = vmatpush.msra.mxu0 %v1921
    %2589 = vmatpush.msra.mxu0 %v1920
    %2590 = vmatpush.msra.mxu0 %v1919
    %2591 = vmatpush.msra.mxu0 %v1918
    %2592 = vmatpush.msra.mxu0 %v1917
    %2593 = vmatpush.msra.mxu0 %v1916
    %2594 = vmatpush.msra.mxu0 %v1915
    %2595 = vmatpush.msra.mxu0 %v1914
    %2596 = vmatpush.msra.mxu0 %v1913
    %2597 = vmatpush.msra.mxu0 %v1912
    %2598 = vmatpush.msra.mxu0 %v1911
    %2599 = vmatpush.msra.mxu0 %v1910
    %2600 = vmatpush.msra.mxu0 %v1909
    %2601 = vmatpush.msra.mxu0 %v1908
    %2602 = vmatpush.msra.mxu0 %v1907
    %2603 = vmatmul.f32.gmra.mxu0 1.0
    %v2604 = vpop.f32.mrf.mxu0
    %v2605 = vadd.f32 %v2585, %v2604
    %2606 = vdwg.mxu0
    %2607 = vst [vmem:[%s7] sm:$0x1] %v2605
    // Predicated region
    $region18: #{vector_quantizer_forward.1} parent=1 // pred_check
      _
    $region19: #{vector_quantizer_forward.1} parent=1 // pred_check_branch
      %2609 = sbr.rel (0) target = $region21
    $region20: #{vector_quantizer_forward.1} parent=1 // pred_region
      _
    $region21: #{vector_quantizer_forward.1} parent=1 // pred_fallthru
      _
    // Predicated region
    $region22: #{vector_quantizer_forward.1} parent=1 // pred_check
      _
    $region23: #{vector_quantizer_forward.1} parent=1 // pred_check_branch
      %2611 = sbr.rel (0) target = $region25
    $region24: #{vector_quantizer_forward.1} parent=1 // pred_region
      _
    $region25: #{vector_quantizer_forward.1} parent=1 // pred_fallthru
      _
    // Predicated region
    $region26: #{vector_quantizer_forward.1} parent=1 // pred_check
      _
    $region27: #{vector_quantizer_forward.1} parent=1 // pred_check_branch
      %2613 = sbr.rel (0) target = $region29
    $region28: #{vector_quantizer_forward.1} parent=1 // pred_region
      %2615 = vsyncadd [#allocation3], 0
      %s2617 = sshll.u32 [#allocation2], 4
      %s2618 = int_to_ptr.vmem [resolvable:$true] %s2617
      %s2619 = sshll.u32 %s6, 4
      %s2620 = int_to_ptr.hbm [resolvable:$true] %s2619
      %2622 = dma.vmem_to_hbm [thread:$0]  %s2618, 16, %s2620, [#allocation3]
    $region29: #{vector_quantizer_forward.1} parent=1 // pred_fallthru
      _
    // Predicated region
    $region30: #{vector_quantizer_forward.1} parent=1 // pred_check
      _
    $region31: #{vector_quantizer_forward.1} parent=1 // pred_check_branch
      %2624 = sbr.rel (0) target = $region33
    $region32: #{vector_quantizer_forward.1} parent=1 // pred_region
      _
    $region33: #{vector_quantizer_forward.1} parent=1 // pred_fallthru
      _
    // Predicated region
    $region34: #{vector_quantizer_forward.1} parent=1 // pred_check
      _
    $region35: #{vector_quantizer_forward.1} parent=1 // pred_check_branch
      %2626 = sbr.rel (0) target = $region37
    $region36: #{vector_quantizer_forward.1} parent=1 // pred_region
      _
    $region37: #{vector_quantizer_forward.1} parent=1 // pred_fallthru
      _
    // Predicated region
    $region38: #{vector_quantizer_forward.1} parent=1 // pred_check
      _
    $region39: #{vector_quantizer_forward.1} parent=1 // pred_check_branch
      %2628 = sbr.rel (0) target = $region41
    $region40: #{vector_quantizer_forward.1} parent=1 // pred_region
      _
    $region41: #{vector_quantizer_forward.1} parent=1 // pred_fallthru
      _
    // Predicated region
    $region42: #{vector_quantizer_forward.1} parent=1 // pred_check
      _
    $region43: #{vector_quantizer_forward.1} parent=1 // pred_check_branch
      %2630 = sbr.rel (0) target = $region45
    $region44: #{vector_quantizer_forward.1} parent=1 // pred_region
      %2632 = dma.done [#allocation3], 16
    $region45: #{vector_quantizer_forward.1} parent=1 // pred_fallthru
      _
    // Predicated region
    $region46: #{vector_quantizer_forward.1} parent=1 // pred_check
      _
    $region47: #{vector_quantizer_forward.1} parent=1 // pred_check_branch
      %2634 = sbr.rel (0) target = $region49
    $region48: #{vector_quantizer_forward.1} parent=1 // pred_region
      _
    $region49: #{vector_quantizer_forward.1} parent=1 // pred_fallthru
      _
    %2635 = vsyncpa [#allocation3], 1

</llo_original>
